<compile_context>
chip_gen: v6e
topology: v6e:2x2x1
jax: 0.10.0
libtpu: 0.0.40
codegen_flags: <defaults>
</compile_context>

<pallas_src>
import functools

import jax
import jax.numpy as jnp
from jax.experimental import pallas as pl
from jax.experimental.pallas import tpu as pltpu


LANE = 128      # pad feature dims to lane width -> dense vst / full MXU N
SUBLANE = 8     # pad node dim to a sublane multiple


def _round_up(x, m):
    return (x + m - 1) // m * m


def _pad2(x, rows, cols):
    r, c = x.shape
    return jnp.pad(x, ((0, rows - r), (0, cols - c)))


# ----------------------------------------------------------------------------
# Fused Pallas kernel: whole SIRModel forward on VMEM-resident operands.
# ----------------------------------------------------------------------------
def _sir_forward_kernel(a_ref, x_ref,
                        w_emb_ref, b_emb_ref,
                        w1_ref, b1_ref, w2_ref, b2_ref,
                        w_ro_ref, b_ro_ref,
                        out_ref,
                        *, num_layers, slope, residual):
    def mm(x, w):
        # bf16 MXU inputs, f32 accumulation.
        return jnp.dot(x.astype(jnp.bfloat16), w.astype(jnp.bfloat16),
                       preferred_element_type=jnp.float32)

    def leaky(x):
        # 2 VPU ops (mul + max); valid for 0 < slope < 1.
        return jnp.maximum(x, slope * x)

    # embedding: MLP_EGC([input_dim, hidden_dim]) == single Linear (no act/norm)
    h = mm(x_ref[...], w_emb_ref[...]) + b_emb_ref[...]      # [N, H] f32

    for l in range(num_layers):                              # static unroll (L small)
        h_resid = h
        # SIRConv (approx, see TODO): Linear1 -> mean agg -> LeakyReLU -> Linear2
        t = mm(h, w1_ref[l]) + b1_ref[l]
        # Read A at the use site (do NOT hoist above the loop): keeps its live
        # range local so it doesn't coexist with every layer's intermediates.
        t = jnp.dot(a_ref[...], t.astype(jnp.bfloat16),
                    preferred_element_type=jnp.float32)      # mean neighbor agg
        t = leaky(t)
        t = mm(t, w2_ref[l]) + b2_ref[l]
        # GetNorm('none') -> identity; Dropout -> identity in eval.
        h = leaky(t)                                         # model-level act
        if residual:
            h = h + h_resid

    out_ref[...] = (mm(h, w_ro_ref[...]) + b_ro_ref[...]).astype(out_ref.dtype)


# ----------------------------------------------------------------------------
# One-time preparation: pad + cast params and graph inputs (done ONCE, not per
# forward call).
# ----------------------------------------------------------------------------
def init_params(key, input_dim, hidden_dim, output_dim, num_layers):
    def lin(key, fan_in, fan_out):
        kw, kb = jax.random.split(key)
        scale = 1.0 / jnp.sqrt(fan_in)
        w = jax.random.uniform(kw, (fan_in, fan_out), jnp.float32, -scale, scale)
        b = jax.random.uniform(kb, (fan_out,), jnp.float32, -scale, scale)
        return w, b

    keys = jax.random.split(key, 2 + 2 * num_layers)
    params = {
        "emb": lin(keys[0], input_dim, hidden_dim),
        "readout": lin(keys[1], hidden_dim, output_dim),
        "convs": [],
    }
    for i in range(num_layers):
        w1, b1 = lin(keys[2 + 2 * i], hidden_dim, hidden_dim)
        w2, b2 = lin(keys[3 + 2 * i], hidden_dim, hidden_dim)
        params["convs"].append((w1, b1, w2, b2))
    return params


def prepare_padded_params(params):
    """Pad feature dims to 128 lanes and cast matmul weights to bf16, ONCE."""
    w_emb, b_emb = params["emb"]
    w_ro, b_ro = params["readout"]
    fin, hid = w_emb.shape
    out_dim = w_ro.shape[1]

    fin_p = _round_up(fin, LANE)
    hid_p = _round_up(hid, LANE)
    out_p = _round_up(out_dim, LANE)

    w1s, b1s, w2s, b2s = [], [], [], []
    for (w1, b1, w2, b2) in params["convs"]:
        w1s.append(_pad2(w1, hid_p, hid_p))
        b1s.append(_pad2(b1.reshape(1, -1), 1, hid_p))
        w2s.append(_pad2(w2, hid_p, hid_p))
        b2s.append(_pad2(b2.reshape(1, -1), 1, hid_p))

    padded = {
        "w_emb": _pad2(w_emb, fin_p, hid_p).astype(jnp.bfloat16),
        "b_emb": _pad2(b_emb.reshape(1, -1), 1, hid_p),               # f32
        "w1": jnp.stack(w1s).astype(jnp.bfloat16),                    # [L, H, H]
        "b1": jnp.stack(b1s),                                         # [L, 1, H] f32
        "w2": jnp.stack(w2s).astype(jnp.bfloat16),
        "b2": jnp.stack(b2s),
        "w_ro": _pad2(w_ro, hid_p, out_p).astype(jnp.bfloat16),
        "b_ro": _pad2(b_ro.reshape(1, -1), 1, out_p),                 # f32
    }
    dims = {"fin": fin, "hid": hid, "out": out_dim,
            "fin_p": fin_p, "hid_p": hid_p, "out_p": out_p}
    return padded, dims


def prepare_padded_graph(a_mean, feats, dims):
    """Pad node dim to a sublane multiple, cast A / feats to bf16, ONCE."""
    n = feats.shape[0]
    n_p = _round_up(n, SUBLANE)
    a_p = _pad2(a_mean, n_p, n_p).astype(jnp.bfloat16)
    x_p = _pad2(feats, n_p, dims["fin_p"]).astype(jnp.bfloat16)
    return a_p, x_p, n, n_p


# ----------------------------------------------------------------------------
# Forward: a single pallas_call on pre-padded operands.
# ----------------------------------------------------------------------------
def sir_model_forward(padded, a_p, x_p, n, n_p, dims, *, num_layers,
                      residual=False, slope=0.2):
    hid_p, out_p, fin_p = dims["hid_p"], dims["out_p"], dims["fin_p"]
    out_dim = dims["out"]

    kernel = functools.partial(
        _sir_forward_kernel,
        num_layers=num_layers, slope=slope, residual=residual,
    )

    # Advisory cost estimate so XLA can schedule around the custom call.
    flops = (2 * n_p * fin_p * hid_p
             + num_layers * (2 * n_p * hid_p * hid_p * 2 + 2 * n_p * n_p * hid_p)
             + 2 * n_p * hid_p * out_p)
    operands = [a_p, x_p, padded["w_emb"], padded["b_emb"],
                padded["w1"], padded["b1"], padded["w2"], padded["b2"],
                padded["w_ro"], padded["b_ro"]]
    bytes_accessed = sum(x.size * x.dtype.itemsize for x in operands) \
        + n_p * out_p * 4
    cost = pl.CostEstimate(flops=flops, transcendentals=0,
                           bytes_accessed=bytes_accessed)

    out_padded = pl.pallas_call(
        kernel,
        out_shape=jax.ShapeDtypeStruct((n_p, out_p), jnp.float32),
        in_specs=[pl.BlockSpec(memory_space=pltpu.MemorySpace.VMEM)
                  for _ in range(len(operands))],
        out_specs=pl.BlockSpec(memory_space=pltpu.MemorySpace.VMEM),
        cost_estimate=cost,
    )(*operands)

    return out_padded[:n, :out_dim]


if __name__ == "__main__":
    N_NODES = 256
    INPUT_DIM = 32
    HIDDEN_DIM = 32
    OUTPUT_DIM = 16
    NUM_LAYERS = 1

    key = jax.random.PRNGKey(0)
    k_feat, k_adj, k_param = jax.random.split(key, 3)

    feats = jax.random.normal(k_feat, (N_NODES, INPUT_DIM), jnp.float32)

    # Random undirected graph with self-loops, row-normalized for mean agg.
    adj = (jax.random.uniform(k_adj, (N_NODES, N_NODES)) < 0.05).astype(jnp.float32)
    adj = jnp.maximum(adj, adj.T)
    adj = adj + jnp.eye(N_NODES, dtype=jnp.float32)
    deg = jnp.clip(adj.sum(axis=1, keepdims=True), 1.0, None)
    a_mean = adj / deg

    params = init_params(k_param, INPUT_DIM, HIDDEN_DIM, OUTPUT_DIM, NUM_LAYERS)

    # One-time padding / casting (kept out of the per-call forward path).
    padded, dims = prepare_padded_params(params)
    a_p, x_p, n, n_p = prepare_padded_graph(a_mean, feats, dims)
    padded = jax.device_put(padded)
    a_p, x_p = jax.device_put(a_p), jax.device_put(x_p)

    out = sir_model_forward(padded, a_p, x_p, n, n_p, dims,
                            num_layers=NUM_LAYERS)
    out = jax.block_until_ready(out)
    assert out.shape == (N_NODES, OUTPUT_DIM)
    print("KERNEL_OK")
</pallas_src>

<mosaic_0001>
module attributes {stable_mosaic.version = 11 : i64} {
  func.func @_sir_forward_kernel(%arg0: memref<256x256xbf16, #tpu.memory_space<vmem>>, %arg1: memref<256x128xbf16, #tpu.memory_space<vmem>>, %arg2: memref<128x128xbf16, #tpu.memory_space<vmem>>, %arg3: memref<1x128xf32, #tpu.memory_space<vmem>>, %arg4: memref<1x128x128xbf16, #tpu.memory_space<vmem>>, %arg5: memref<1x1x128xf32, #tpu.memory_space<vmem>>, %arg6: memref<1x128x128xbf16, #tpu.memory_space<vmem>>, %arg7: memref<1x1x128xf32, #tpu.memory_space<vmem>>, %arg8: memref<128x128xbf16, #tpu.memory_space<vmem>>, %arg9: memref<1x128xf32, #tpu.memory_space<vmem>>, %arg10: memref<256x128xf32, #tpu.memory_space<vmem>>) attributes {dimension_semantics = [], scalar_prefetch = 0 : i64, scratch_operands = 0 : i64, tpu.core_type = #tpu.core_type<tc>} {
    %c0 = arith.constant 0 : index
    %c0_0 = arith.constant 0 : index
    %0 = vector.load %arg1[%c0, %c0_0] : memref<256x128xbf16, #tpu.memory_space<vmem>>, vector<256x128xbf16>
    %c0_1 = arith.constant 0 : index
    %c0_2 = arith.constant 0 : index
    %1 = vector.load %arg2[%c0_1, %c0_2] : memref<128x128xbf16, #tpu.memory_space<vmem>>, vector<128x128xbf16>
    %cst = arith.constant dense<0.000000e+00> : vector<256x128xf32>
    %2 = tpu.matmul %0, %1, %cst {dimension_numbers = #tpu.dot_dimension_numbers<[1], [0], [0], [1], [0, 0, 1, 1], [], []>} : vector<256x128xbf16>, vector<128x128xbf16>, vector<256x128xf32> -> vector<256x128xf32>
    %c0_3 = arith.constant 0 : index
    %c0_4 = arith.constant 0 : index
    %3 = vector.load %arg3[%c0_3, %c0_4] : memref<1x128xf32, #tpu.memory_space<vmem>>, vector<1x128xf32>
    %4 = vector.broadcast %3 : vector<1x128xf32> to vector<256x128xf32>
    %5 = arith.addf %2, %4 : vector<256x128xf32>
    %c0_5 = arith.constant 0 : index
    %c0_6 = arith.constant 0 : index
    %c0_7 = arith.constant 0 : index
    %6 = vector.load %arg4[%c0_5, %c0_6, %c0_7] : memref<1x128x128xbf16, #tpu.memory_space<vmem>>, vector<1x128x128xbf16>
    %7 = vector.shape_cast %6 : vector<1x128x128xbf16> to vector<128x128xbf16>
    %8 = arith.truncf %5 : vector<256x128xf32> to vector<256x128xbf16>
    %cst_8 = arith.constant dense<0.000000e+00> : vector<256x128xf32>
    %9 = tpu.matmul %8, %7, %cst_8 {dimension_numbers = #tpu.dot_dimension_numbers<[1], [0], [0], [1], [0, 0, 1, 1], [], []>} : vector<256x128xbf16>, vector<128x128xbf16>, vector<256x128xf32> -> vector<256x128xf32>
    %c0_9 = arith.constant 0 : index
    %c0_10 = arith.constant 0 : index
    %c0_11 = arith.constant 0 : index
    %10 = vector.load %arg5[%c0_9, %c0_10, %c0_11] : memref<1x1x128xf32, #tpu.memory_space<vmem>>, vector<1x1x128xf32>
    %11 = vector.shape_cast %10 : vector<1x1x128xf32> to vector<1x128xf32>
    %12 = vector.broadcast %11 : vector<1x128xf32> to vector<256x128xf32>
    %13 = arith.addf %9, %12 : vector<256x128xf32>
    %c0_12 = arith.constant 0 : index
    %c0_13 = arith.constant 0 : index
    %14 = vector.load %arg0[%c0_12, %c0_13] : memref<256x256xbf16, #tpu.memory_space<vmem>>, vector<256x256xbf16>
    %15 = arith.truncf %13 : vector<256x128xf32> to vector<256x128xbf16>
    %cst_14 = arith.constant dense<0.000000e+00> : vector<256x128xf32>
    %16 = tpu.matmul %14, %15, %cst_14 {dimension_numbers = #tpu.dot_dimension_numbers<[1], [0], [0], [1], [0, 0, 1, 1], [], []>} : vector<256x256xbf16>, vector<256x128xbf16>, vector<256x128xf32> -> vector<256x128xf32>
    %cst_15 = arith.constant 2.000000e-01 : f32
    %17 = vector.broadcast %cst_15 : f32 to vector<256x128xf32>
    %18 = arith.mulf %17, %16 : vector<256x128xf32>
    %19 = arith.maximumf %16, %18 : vector<256x128xf32>
    %c0_16 = arith.constant 0 : index
    %c0_17 = arith.constant 0 : index
    %c0_18 = arith.constant 0 : index
    %20 = vector.load %arg6[%c0_16, %c0_17, %c0_18] : memref<1x128x128xbf16, #tpu.memory_space<vmem>>, vector<1x128x128xbf16>
    %21 = vector.shape_cast %20 : vector<1x128x128xbf16> to vector<128x128xbf16>
    %22 = arith.truncf %19 : vector<256x128xf32> to vector<256x128xbf16>
    %cst_19 = arith.constant dense<0.000000e+00> : vector<256x128xf32>
    %23 = tpu.matmul %22, %21, %cst_19 {dimension_numbers = #tpu.dot_dimension_numbers<[1], [0], [0], [1], [0, 0, 1, 1], [], []>} : vector<256x128xbf16>, vector<128x128xbf16>, vector<256x128xf32> -> vector<256x128xf32>
    %c0_20 = arith.constant 0 : index
    %c0_21 = arith.constant 0 : index
    %c0_22 = arith.constant 0 : index
    %24 = vector.load %arg7[%c0_20, %c0_21, %c0_22] : memref<1x1x128xf32, #tpu.memory_space<vmem>>, vector<1x1x128xf32>
    %25 = vector.shape_cast %24 : vector<1x1x128xf32> to vector<1x128xf32>
    %26 = vector.broadcast %25 : vector<1x128xf32> to vector<256x128xf32>
    %27 = arith.addf %23, %26 : vector<256x128xf32>
    %cst_23 = arith.constant 2.000000e-01 : f32
    %28 = vector.broadcast %cst_23 : f32 to vector<256x128xf32>
    %29 = arith.mulf %28, %27 : vector<256x128xf32>
    %30 = arith.maximumf %27, %29 : vector<256x128xf32>
    %c0_24 = arith.constant 0 : index
    %c0_25 = arith.constant 0 : index
    %31 = vector.load %arg8[%c0_24, %c0_25] : memref<128x128xbf16, #tpu.memory_space<vmem>>, vector<128x128xbf16>
    %32 = arith.truncf %30 : vector<256x128xf32> to vector<256x128xbf16>
    %cst_26 = arith.constant dense<0.000000e+00> : vector<256x128xf32>
    %33 = tpu.matmul %32, %31, %cst_26 {dimension_numbers = #tpu.dot_dimension_numbers<[1], [0], [0], [1], [0, 0, 1, 1], [], []>} : vector<256x128xbf16>, vector<128x128xbf16>, vector<256x128xf32> -> vector<256x128xf32>
    %c0_27 = arith.constant 0 : index
    %c0_28 = arith.constant 0 : index
    %34 = vector.load %arg9[%c0_27, %c0_28] : memref<1x128xf32, #tpu.memory_space<vmem>>, vector<1x128xf32>
    %35 = vector.broadcast %34 : vector<1x128xf32> to vector<256x128xf32>
    %36 = arith.addf %33, %35 : vector<256x128xf32>
    %c0_29 = arith.constant 0 : index
    %c0_30 = arith.constant 0 : index
    %37 = vector.load %arg10[%c0_29, %c0_30] : memref<256x128xf32, #tpu.memory_space<vmem>>, vector<256x128xf32>
    tpu.vector_store %arg10[%c0_29, %c0_30], %36 {strides = array<i32>} : memref<256x128xf32, #tpu.memory_space<vmem>>, vector<256x128xf32>,
    return
  }
}

</mosaic_0001>

<llo_original>
// kernel: tpu_custom_call.1
$region0: #{tpu_custom_call.1}
  #allocation0 [shape = 'u32[]', space=smem, size = 0x4, offset = 0x4, fixed_abs, tag = 'smem constant byte address 0x4 - core index']
  #allocation1 [shape = 'u32[144,128]{1,0:T(1,128)}', space=vmem, size = 0x12000, scoped, tag = 'internal scratch']
  %s0 = inlined_call_operand.hbm [shape: bf16[256,256], index: 0, kind: input, shape index: {}]
  %s1 = inlined_call_operand.hbm [shape: bf16[256,128], index: 1, kind: input, shape index: {}]
  %s2 = inlined_call_operand.hbm [shape: bf16[128,128], index: 2, kind: input, shape index: {}]
  %s3 = inlined_call_operand.vmem [shape: f32[1,128], index: 3, kind: input, shape index: {}]
  %s4 = inlined_call_operand.hbm [shape: bf16[1,128,128], index: 4, kind: input, shape index: {}]
  %s5 = inlined_call_operand.vmem [shape: f32[1,1,128], index: 5, kind: input, shape index: {}]
  %s6 = inlined_call_operand.hbm [shape: bf16[1,128,128], index: 6, kind: input, shape index: {}]
  %s7 = inlined_call_operand.vmem [shape: f32[1,1,128], index: 7, kind: input, shape index: {}]
  %s8 = inlined_call_operand.hbm [shape: bf16[128,128], index: 8, kind: input, shape index: {}]
  %s9 = inlined_call_operand.vmem [shape: f32[1,128], index: 9, kind: input, shape index: {}]
  %s10 = inlined_call_operand.hbm [shape: f32[256,128], index: 10, kind: output, shape index: {}]
  %s11 = sld [smem:[#allocation0]]
  $region74: #{tpu_custom_call.1} parent=0
    _
  %s13 = ssub.s32 1, %s11
  %s14 = scalar_select 0, %s13, %s11
  $region1: #{tpu_custom_call.1} parent=0
    #allocation2 [shape = 'u8[131072]{0}', space=vmem, size = 0x20000, scoped, tag = 'input window, operand 0, single buffered']
    #allocation3 [shape = 's32[1]{0}', space=sflag, size = 0x4, scoped, tag = 'scoped memory for tpu_custom_call.1']
    #allocation4 [shape = 's32[1]{0}', space=sflag, size = 0x4, scoped, tag = 'scoped memory for tpu_custom_call.1']
    #allocation5 [shape = 'u8[65536]{0}', space=vmem, size = 0x10000, scoped, tag = 'input window, operand 1, single buffered']
    #allocation6 [shape = 's32[1]{0}', space=sflag, size = 0x4, scoped, tag = 'scoped memory for tpu_custom_call.1']
    #allocation7 [shape = 'u8[32768]{0}', space=vmem, size = 0x8000, scoped, tag = 'input window, operand 2, single buffered']
    #allocation8 [shape = 'u8[32768]{0}', space=vmem, size = 0x8000, scoped, tag = 'input window, operand 4, single buffered']
    #allocation9 [shape = 's32[1]{0}', space=sflag, size = 0x4, scoped, tag = 'scoped memory for tpu_custom_call.1']
    #allocation10 [shape = 'u8[32768]{0}', space=vmem, size = 0x8000, scoped, tag = 'input window, operand 6, single buffered']
    #allocation11 [shape = 'u8[32768]{0}', space=vmem, size = 0x8000, scoped, tag = 'input window, operand 8, single buffered']
    #allocation12 [shape = 's32[1]{0}', space=sflag, size = 0x4, scoped, tag = 'scoped memory for tpu_custom_call.1']
    #allocation13 [shape = 'u8[131072]{0}', space=vmem, size = 0x20000, scoped, tag = 'output window, operand 0, single buffered']
    %15 = vsyncpa [#allocation3], 0
    %16 = vsyncpa [#allocation6], 0
    %17 = vsyncpa [#allocation9], 0
    %18 = vsyncpa [#allocation12], 0
    %19 = vsyncpa [#allocation4], 0
    // Predicated region
    $region2: #{tpu_custom_call.1} parent=1 // pred_check
      _
    $region3: #{tpu_custom_call.1} parent=1 // pred_check_branch
      %21 = sbr.rel (0) target = $region5
    $region4: #{tpu_custom_call.1} parent=1 // pred_region
      %s23 = ssub.s32 4096, 4096
      %24 = vsyncadd [#allocation3], %s23
      %s25 = sshll.u32 [#allocation2], 4
      %s26 = int_to_ptr.vmem [resolvable:$true] %s25
      %31 = dma.hbm_to_vmem [thread:$0]  %s0, 4096, %s26, [#allocation3], 128, 128, 8
    $region5: #{tpu_custom_call.1} parent=1 // pred_fallthru
      _
    // Predicated region
    $region6: #{tpu_custom_call.1} parent=1 // pred_check
      _
    $region7: #{tpu_custom_call.1} parent=1 // pred_check_branch
      %33 = sbr.rel (0) target = $region9
    $region8: #{tpu_custom_call.1} parent=1 // pred_region
      %s35 = ssub.s32 2048, 2048
      %36 = vsyncadd [#allocation6], %s35
      %s37 = sshll.u32 [#allocation5], 4
      %s38 = int_to_ptr.vmem [resolvable:$true] %s37
      %43 = dma.hbm_to_vmem [thread:$0]  %s1, 2048, %s38, [#allocation6], 64, 64, 4
    $region9: #{tpu_custom_call.1} parent=1 // pred_fallthru
      _
    // Predicated region
    $region10: #{tpu_custom_call.1} parent=1 // pred_check
      _
    $region11: #{tpu_custom_call.1} parent=1 // pred_check_branch
      %45 = sbr.rel (0) target = $region13
    $region12: #{tpu_custom_call.1} parent=1 // pred_region
      %s47 = ssub.s32 1024, 1024
      %48 = vsyncadd [#allocation6], %s47
      %s49 = sshll.u32 [#allocation7], 4
      %s50 = int_to_ptr.vmem [resolvable:$true] %s49
      %55 = dma.hbm_to_vmem [thread:$0]  %s2, 1024, %s50, [#allocation6], 64, 64, 4
    $region13: #{tpu_custom_call.1} parent=1 // pred_fallthru
      _
    // Predicated region
    $region14: #{tpu_custom_call.1} parent=1 // pred_check
      _
    $region15: #{tpu_custom_call.1} parent=1 // pred_check_branch
      %57 = sbr.rel (0) target = $region17
    $region16: #{tpu_custom_call.1} parent=1 // pred_region
      _
    $region17: #{tpu_custom_call.1} parent=1 // pred_fallthru
      _
    // Predicated region
    $region18: #{tpu_custom_call.1} parent=1 // pred_check
      _
    $region19: #{tpu_custom_call.1} parent=1 // pred_check_branch
      %59 = sbr.rel (0) target = $region21
    $region20: #{tpu_custom_call.1} parent=1 // pred_region
      %s61 = ssub.s32 1024, 1024
      %62 = vsyncadd [#allocation9], %s61
      %s63 = sshll.u32 [#allocation8], 4
      %s64 = int_to_ptr.vmem [resolvable:$true] %s63
      %69 = dma.hbm_to_vmem [thread:$0]  %s4, 1024, %s64, [#allocation9], 64, 64, 4
    $region21: #{tpu_custom_call.1} parent=1 // pred_fallthru
      _
    // Predicated region
    $region22: #{tpu_custom_call.1} parent=1 // pred_check
      _
    $region23: #{tpu_custom_call.1} parent=1 // pred_check_branch
      %71 = sbr.rel (0) target = $region25
    $region24: #{tpu_custom_call.1} parent=1 // pred_region
      _
    $region25: #{tpu_custom_call.1} parent=1 // pred_fallthru
      _
    // Predicated region
    $region26: #{tpu_custom_call.1} parent=1 // pred_check
      _
    $region27: #{tpu_custom_call.1} parent=1 // pred_check_branch
      %73 = sbr.rel (0) target = $region29
    $region28: #{tpu_custom_call.1} parent=1 // pred_region
      %s75 = ssub.s32 1024, 1024
      %76 = vsyncadd [#allocation9], %s75
      %s77 = sshll.u32 [#allocation10], 4
      %s78 = int_to_ptr.vmem [resolvable:$true] %s77
      %83 = dma.hbm_to_vmem [thread:$0]  %s6, 1024, %s78, [#allocation9], 64, 64, 4
    $region29: #{tpu_custom_call.1} parent=1 // pred_fallthru
      _
    // Predicated region
    $region30: #{tpu_custom_call.1} parent=1 // pred_check
      _
    $region31: #{tpu_custom_call.1} parent=1 // pred_check_branch
      %85 = sbr.rel (0) target = $region33
    $region32: #{tpu_custom_call.1} parent=1 // pred_region
      _
    $region33: #{tpu_custom_call.1} parent=1 // pred_fallthru
      _
    // Predicated region
    $region34: #{tpu_custom_call.1} parent=1 // pred_check
      _
    $region35: #{tpu_custom_call.1} parent=1 // pred_check_branch
      %87 = sbr.rel (0) target = $region37
    $region36: #{tpu_custom_call.1} parent=1 // pred_region
      %s89 = ssub.s32 1024, 1024
      %90 = vsyncadd [#allocation12], %s89
      %s91 = sshll.u32 [#allocation11], 4
      %s92 = int_to_ptr.vmem [resolvable:$true] %s91
      %97 = dma.hbm_to_vmem [thread:$0]  %s8, 1024, %s92, [#allocation12], 64, 64, 4
    $region37: #{tpu_custom_call.1} parent=1 // pred_fallthru
      _
    // Predicated region
    $region38: #{tpu_custom_call.1} parent=1 // pred_check
      _
    $region39: #{tpu_custom_call.1} parent=1 // pred_check_branch
      %99 = sbr.rel (0) target = $region41
    $region40: #{tpu_custom_call.1} parent=1 // pred_region
      _
    $region41: #{tpu_custom_call.1} parent=1 // pred_fallthru
      _
    // Predicated region
    $region42: #{tpu_custom_call.1} parent=1 // pred_check
      _
    $region43: #{tpu_custom_call.1} parent=1 // pred_check_branch
      %101 = sbr.rel (0) target = $region45
    $region44: #{tpu_custom_call.1} parent=1 // pred_region
      %102 = dma.done [#allocation3], 4096
    $region45: #{tpu_custom_call.1} parent=1 // pred_fallthru
      _
    // Predicated region
    $region46: #{tpu_custom_call.1} parent=1 // pred_check
      _
    $region47: #{tpu_custom_call.1} parent=1 // pred_check_branch
      %104 = sbr.rel (0) target = $region49
    $region48: #{tpu_custom_call.1} parent=1 // pred_region
      %105 = dma.done [#allocation6], 2048
    $region49: #{tpu_custom_call.1} parent=1 // pred_fallthru
      _
    // Predicated region
    $region50: #{tpu_custom_call.1} parent=1 // pred_check
      _
    $region51: #{tpu_custom_call.1} parent=1 // pred_check_branch
      %107 = sbr.rel (0) target = $region53
    $region52: #{tpu_custom_call.1} parent=1 // pred_region
      %108 = dma.done [#allocation6], 1024
    $region53: #{tpu_custom_call.1} parent=1 // pred_fallthru
      _
    // Predicated region
    $region54: #{tpu_custom_call.1} parent=1 // pred_check
      _
    $region55: #{tpu_custom_call.1} parent=1 // pred_check_branch
      %110 = sbr.rel (0) target = $region57
    $region56: #{tpu_custom_call.1} parent=1 // pred_region
      %111 = dma.done [#allocation9], 1024
    $region57: #{tpu_custom_call.1} parent=1 // pred_fallthru
      _
    // Predicated region
    $region58: #{tpu_custom_call.1} parent=1 // pred_check
      _
    $region59: #{tpu_custom_call.1} parent=1 // pred_check_branch
      %113 = sbr.rel (0) target = $region61
    $region60: #{tpu_custom_call.1} parent=1 // pred_region
      %114 = dma.done [#allocation9], 1024
    $region61: #{tpu_custom_call.1} parent=1 // pred_fallthru
      _
    // Predicated region
    $region62: #{tpu_custom_call.1} parent=1 // pred_check
      _
    $region63: #{tpu_custom_call.1} parent=1 // pred_check_branch
      %116 = sbr.rel (0) target = $region65
    $region64: #{tpu_custom_call.1} parent=1 // pred_region
      %117 = dma.done [#allocation12], 1024
    $region65: #{tpu_custom_call.1} parent=1 // pred_fallthru
      _
    %v119 = vld [vmem:[#allocation5] sm:$0xf]
    %v120 = vld [vmem:[#allocation5 + $0x4] sm:$0xf]
    %v121 = vld [vmem:[#allocation5 + $0x8] sm:$0xf]
    %v122 = vld [vmem:[#allocation5 + $0xc] sm:$0xf]
    %v123 = vld [vmem:[#allocation5 + $0x10] sm:$0xf]
    %v124 = vld [vmem:[#allocation5 + $0x14] sm:$0xf]
    %v125 = vld [vmem:[#allocation5 + $0x18] sm:$0xf]
    %v126 = vld [vmem:[#allocation5 + $0x1c] sm:$0xf]
    %v127 = vld [vmem:[#allocation5 + $0x20] sm:$0xf]
    %v128 = vld [vmem:[#allocation5 + $0x24] sm:$0xf]
    %v129 = vld [vmem:[#allocation5 + $0x28] sm:$0xf]
    %v130 = vld [vmem:[#allocation5 + $0x2c] sm:$0xf]
    %v131 = vld [vmem:[#allocation5 + $0x30] sm:$0xf]
    %v132 = vld [vmem:[#allocation5 + $0x34] sm:$0xf]
    %v133 = vld [vmem:[#allocation5 + $0x38] sm:$0xf]
    %v134 = vld [vmem:[#allocation5 + $0x3c] sm:$0xf]
    %v135 = vld [vmem:[#allocation5 + $0x40] sm:$0xf]
    %v136 = vld [vmem:[#allocation5 + $0x44] sm:$0xf]
    %v137 = vld [vmem:[#allocation5 + $0x48] sm:$0xf]
    %v138 = vld [vmem:[#allocation5 + $0x4c] sm:$0xf]
    %v139 = vld [vmem:[#allocation5 + $0x50] sm:$0xf]
    %v140 = vld [vmem:[#allocation5 + $0x54] sm:$0xf]
    %v141 = vld [vmem:[#allocation5 + $0x58] sm:$0xf]
    %v142 = vld [vmem:[#allocation5 + $0x5c] sm:$0xf]
    %v143 = vld [vmem:[#allocation5 + $0x60] sm:$0xf]
    %v144 = vld [vmem:[#allocation5 + $0x64] sm:$0xf]
    %v145 = vld [vmem:[#allocation5 + $0x68] sm:$0xf]
    %v146 = vld [vmem:[#allocation5 + $0x6c] sm:$0xf]
    %v147 = vld [vmem:[#allocation5 + $0x70] sm:$0xf]
    %v148 = vld [vmem:[#allocation5 + $0x74] sm:$0xf]
    %v149 = vld [vmem:[#allocation5 + $0x78] sm:$0xf]
    %v150 = vld [vmem:[#allocation5 + $0x7c] sm:$0xf]
    %v151 = vld [vmem:[#allocation7] sm:$0xf]
    %v152 = vld [vmem:[#allocation7 + $0x4] sm:$0xf]
    %v153 = vld [vmem:[#allocation7 + $0x8] sm:$0xf]
    %v154 = vld [vmem:[#allocation7 + $0xc] sm:$0xf]
    %v155 = vld [vmem:[#allocation7 + $0x10] sm:$0xf]
    %v156 = vld [vmem:[#allocation7 + $0x14] sm:$0xf]
    %v157 = vld [vmem:[#allocation7 + $0x18] sm:$0xf]
    %v158 = vld [vmem:[#allocation7 + $0x1c] sm:$0xf]
    %v159 = vld [vmem:[#allocation7 + $0x20] sm:$0xf]
    %v160 = vld [vmem:[#allocation7 + $0x24] sm:$0xf]
    %v161 = vld [vmem:[#allocation7 + $0x28] sm:$0xf]
    %v162 = vld [vmem:[#allocation7 + $0x2c] sm:$0xf]
    %v163 = vld [vmem:[#allocation7 + $0x30] sm:$0xf]
    %v164 = vld [vmem:[#allocation7 + $0x34] sm:$0xf]
    %v165 = vld [vmem:[#allocation7 + $0x38] sm:$0xf]
    %v166 = vld [vmem:[#allocation7 + $0x3c] sm:$0xf]
    %v167 = vld [vmem:[%s3] sm:$0x1]
    %v169 = vlaneseq
    %v170 = vshrl.u32 %v169, 7
    %v171 = vsub.s32 0, %v170
    %v172 = vrot.slane %v167, %v171
    %v206 = vunpack.c.l.b16 %v119
    %v207 = vunpack.c.l.b16 %v120
    %v208 = vunpack.c.l.b16 %v121
    %v209 = vunpack.c.l.b16 %v122
    %v210 = vunpack.c.l.b16 %v123
    %v211 = vunpack.c.l.b16 %v124
    %v212 = vunpack.c.l.b16 %v125
    %v213 = vunpack.c.l.b16 %v126
    %v214 = vunpack.c.l.b16 %v127
    %v215 = vunpack.c.l.b16 %v128
    %v216 = vunpack.c.l.b16 %v129
    %v217 = vunpack.c.l.b16 %v130
    %v218 = vunpack.c.l.b16 %v131
    %v219 = vunpack.c.l.b16 %v132
    %v220 = vunpack.c.l.b16 %v133
    %v221 = vunpack.c.l.b16 %v134
    %v222 = vunpack.c.l.b16 %v135
    %v223 = vunpack.c.l.b16 %v136
    %v224 = vunpack.c.l.b16 %v137
    %v225 = vunpack.c.l.b16 %v138
    %v226 = vunpack.c.l.b16 %v139
    %v227 = vunpack.c.l.b16 %v140
    %v228 = vunpack.c.l.b16 %v141
    %v229 = vunpack.c.l.b16 %v142
    %v230 = vunpack.c.l.b16 %v143
    %v231 = vunpack.c.l.b16 %v144
    %v232 = vunpack.c.l.b16 %v145
    %v233 = vunpack.c.l.b16 %v146
    %v234 = vunpack.c.l.b16 %v147
    %v235 = vunpack.c.l.b16 %v148
    %v236 = vunpack.c.l.b16 %v149
    %v237 = vunpack.c.l.b16 %v150
    %v238 = vpack.c.b16 %v207, %v206
    %v239 = vpack.c.b16 %v209, %v208
    %v240 = vpack.c.b16 %v211, %v210
    %v241 = vpack.c.b16 %v213, %v212
    %v242 = vpack.c.b16 %v215, %v214
    %v243 = vpack.c.b16 %v217, %v216
    %v244 = vpack.c.b16 %v219, %v218
    %v245 = vpack.c.b16 %v221, %v220
    %v246 = vpack.c.b16 %v223, %v222
    %v247 = vpack.c.b16 %v225, %v224
    %v248 = vpack.c.b16 %v227, %v226
    %v249 = vpack.c.b16 %v229, %v228
    %v250 = vpack.c.b16 %v231, %v230
    %v251 = vpack.c.b16 %v233, %v232
    %v252 = vpack.c.b16 %v235, %v234
    %v253 = vpack.c.b16 %v237, %v236
    %v286 = vunpack.c.l.b16 %v151
    %v287 = vunpack.c.l.b16 %v152
    %v288 = vunpack.c.l.b16 %v153
    %v289 = vunpack.c.l.b16 %v154
    %v290 = vunpack.c.l.b16 %v155
    %v291 = vunpack.c.l.b16 %v156
    %v292 = vunpack.c.l.b16 %v157
    %v293 = vunpack.c.l.b16 %v158
    %v294 = vunpack.c.l.b16 %v159
    %v295 = vunpack.c.l.b16 %v160
    %v296 = vunpack.c.l.b16 %v161
    %v297 = vunpack.c.l.b16 %v162
    %v298 = vunpack.c.l.b16 %v163
    %v299 = vunpack.c.l.b16 %v164
    %v300 = vunpack.c.l.b16 %v165
    %v301 = vunpack.c.l.b16 %v166
    %v302 = vpack.c.b16 %v287, %v286
    %v303 = vpack.c.b16 %v289, %v288
    %v304 = vpack.c.b16 %v291, %v290
    %v305 = vpack.c.b16 %v293, %v292
    %v306 = vpack.c.b16 %v295, %v294
    %v307 = vpack.c.b16 %v297, %v296
    %v308 = vpack.c.b16 %v299, %v298
    %v309 = vpack.c.b16 %v301, %v300
    %318 = vmatprep.subr.bf16.mxu0 0
    %319 = vmatpush1.bf16.msra.mxu0 %v309
    %320 = vmatprep.subr.bf16.mxu0 0
    %321 = vmatpush1.bf16.msra.mxu0 %v308
    %322 = vmatprep.subr.bf16.mxu0 0
    %323 = vmatpush1.bf16.msra.mxu0 %v307
    %324 = vmatprep.subr.bf16.mxu0 0
    %325 = vmatpush1.bf16.msra.mxu0 %v306
    %326 = vmatprep.subr.bf16.mxu0 0
    %327 = vmatpush1.bf16.msra.mxu0 %v305
    %328 = vmatprep.subr.bf16.mxu0 0
    %329 = vmatpush1.bf16.msra.mxu0 %v304
    %330 = vmatprep.subr.bf16.mxu0 0
    %331 = vmatpush1.bf16.msra.mxu0 %v303
    %332 = vmatprep.subr.bf16.mxu0 0
    %333 = vmatpush1.bf16.msra.mxu0 %v302
    %334 = vmatprep.subr.bf16.mxu0 0
    %335 = vmatpush2.bf16.msra.mxu0 0
    %336 = vmatprep.subr.bf16.mxu0 0
    %337 = vmatpush2.bf16.msra.mxu0 0
    %338 = vmatprep.subr.bf16.mxu0 0
    %339 = vmatpush2.bf16.msra.mxu0 0
    %340 = vmatprep.subr.bf16.mxu0 0
    %341 = vmatpush2.bf16.msra.mxu0 0
    %342 = vmatprep.subr.bf16.mxu0 0
    %343 = vmatpush2.bf16.msra.mxu0 0
    %344 = vmatprep.subr.bf16.mxu0 0
    %345 = vmatpush2.bf16.msra.mxu0 0
    %346 = vmatprep.subr.bf16.mxu0 0
    %347 = vmatpush2.bf16.msra.mxu0 0
    %348 = vmatprep.subr.bf16.mxu0 0
    %349 = vmatpush2.bf16.msra.mxu0 0
    %350 = vmatprep.mubr.bf16.mxu0 0
    %351 = vmatmul.mubr.bf16.gmra.mxu0 %v238
    %v352 = vpop.f32.mrf.mxu0
    %v353 = vadd.f32 %v172, %v352
    %v354 = vpop.f32.mrf.mxu0
    %v355 = vpop.f32.mrf.mxu0
    %v356 = vadd.f32 %v172, %v355
    %v357 = vpop.f32.mrf.mxu0
    %358 = vmatprep.mubr.bf16.mxu0 0
    %359 = vmatmul.mubr.bf16.gmra.mxu0 %v239
    %v360 = vpop.f32.mrf.mxu0
    %v361 = vadd.f32 %v172, %v360
    %v362 = vpop.f32.mrf.mxu0
    %v363 = vpop.f32.mrf.mxu0
    %v364 = vadd.f32 %v172, %v363
    %v365 = vpop.f32.mrf.mxu0
    %366 = vmatprep.mubr.bf16.mxu0 0
    %367 = vmatmul.mubr.bf16.gmra.mxu0 %v240
    %v368 = vpop.f32.mrf.mxu0
    %v369 = vadd.f32 %v172, %v368
    %v370 = vpop.f32.mrf.mxu0
    %v371 = vpop.f32.mrf.mxu0
    %v372 = vadd.f32 %v172, %v371
    %v373 = vpop.f32.mrf.mxu0
    %374 = vmatprep.mubr.bf16.mxu0 0
    %375 = vmatmul.mubr.bf16.gmra.mxu0 %v241
    %v376 = vpop.f32.mrf.mxu0
    %v377 = vadd.f32 %v172, %v376
    %v378 = vpop.f32.mrf.mxu0
    %v379 = vpop.f32.mrf.mxu0
    %v380 = vadd.f32 %v172, %v379
    %v381 = vpop.f32.mrf.mxu0
    %382 = vmatprep.mubr.bf16.mxu0 0
    %383 = vmatmul.mubr.bf16.gmra.mxu0 %v242
    %v384 = vpop.f32.mrf.mxu0
    %v385 = vadd.f32 %v172, %v384
    %v386 = vpop.f32.mrf.mxu0
    %v387 = vpop.f32.mrf.mxu0
    %v388 = vadd.f32 %v172, %v387
    %v389 = vpop.f32.mrf.mxu0
    %390 = vmatprep.mubr.bf16.mxu0 0
    %391 = vmatmul.mubr.bf16.gmra.mxu0 %v243
    %v392 = vpop.f32.mrf.mxu0
    %v393 = vadd.f32 %v172, %v392
    %v394 = vpop.f32.mrf.mxu0
    %v395 = vpop.f32.mrf.mxu0
    %v396 = vadd.f32 %v172, %v395
    %v397 = vpop.f32.mrf.mxu0
    %398 = vmatprep.mubr.bf16.mxu0 0
    %399 = vmatmul.mubr.bf16.gmra.mxu0 %v244
    %v400 = vpop.f32.mrf.mxu0
    %v401 = vadd.f32 %v172, %v400
    %v402 = vpop.f32.mrf.mxu0
    %v403 = vpop.f32.mrf.mxu0
    %v404 = vadd.f32 %v172, %v403
    %v405 = vpop.f32.mrf.mxu0
    %406 = vmatprep.mubr.bf16.mxu0 0
    %407 = vmatmul.mubr.bf16.gmra.mxu0 %v245
    %v408 = vpop.f32.mrf.mxu0
    %v409 = vadd.f32 %v172, %v408
    %v410 = vpop.f32.mrf.mxu0
    %v411 = vpop.f32.mrf.mxu0
    %v412 = vadd.f32 %v172, %v411
    %v413 = vpop.f32.mrf.mxu0
    %414 = vmatprep.mubr.bf16.mxu0 0
    %415 = vmatmul.mubr.bf16.gmra.mxu0 %v246
    %v416 = vpop.f32.mrf.mxu0
    %v417 = vadd.f32 %v172, %v416
    %v418 = vpop.f32.mrf.mxu0
    %v419 = vpop.f32.mrf.mxu0
    %v420 = vadd.f32 %v172, %v419
    %v421 = vpop.f32.mrf.mxu0
    %422 = vmatprep.mubr.bf16.mxu0 0
    %423 = vmatmul.mubr.bf16.gmra.mxu0 %v247
    %v424 = vpop.f32.mrf.mxu0
    %v425 = vadd.f32 %v172, %v424
    %v426 = vpop.f32.mrf.mxu0
    %v427 = vpop.f32.mrf.mxu0
    %v428 = vadd.f32 %v172, %v427
    %v429 = vpop.f32.mrf.mxu0
    %430 = vmatprep.mubr.bf16.mxu0 0
    %431 = vmatmul.mubr.bf16.gmra.mxu0 %v248
    %v432 = vpop.f32.mrf.mxu0
    %v433 = vadd.f32 %v172, %v432
    %v434 = vpop.f32.mrf.mxu0
    %v435 = vpop.f32.mrf.mxu0
    %v436 = vadd.f32 %v172, %v435
    %v437 = vpop.f32.mrf.mxu0
    %438 = vmatprep.mubr.bf16.mxu0 0
    %439 = vmatmul.mubr.bf16.gmra.mxu0 %v249
    %v440 = vpop.f32.mrf.mxu0
    %v441 = vadd.f32 %v172, %v440
    %v442 = vpop.f32.mrf.mxu0
    %v443 = vpop.f32.mrf.mxu0
    %v444 = vadd.f32 %v172, %v443
    %v445 = vpop.f32.mrf.mxu0
    %446 = vmatprep.mubr.bf16.mxu0 0
    %447 = vmatmul.mubr.bf16.gmra.mxu0 %v250
    %v448 = vpop.f32.mrf.mxu0
    %v449 = vadd.f32 %v172, %v448
    %v450 = vpop.f32.mrf.mxu0
    %v451 = vpop.f32.mrf.mxu0
    %v452 = vadd.f32 %v172, %v451
    %v453 = vpop.f32.mrf.mxu0
    %454 = vmatprep.mubr.bf16.mxu0 0
    %455 = vmatmul.mubr.bf16.gmra.mxu0 %v251
    %v456 = vpop.f32.mrf.mxu0
    %v457 = vadd.f32 %v172, %v456
    %v458 = vpop.f32.mrf.mxu0
    %v459 = vpop.f32.mrf.mxu0
    %v460 = vadd.f32 %v172, %v459
    %v461 = vpop.f32.mrf.mxu0
    %462 = vmatprep.mubr.bf16.mxu0 0
    %463 = vmatmul.mubr.bf16.gmra.mxu0 %v252
    %v464 = vpop.f32.mrf.mxu0
    %v465 = vadd.f32 %v172, %v464
    %v466 = vpop.f32.mrf.mxu0
    %v467 = vpop.f32.mrf.mxu0
    %v468 = vadd.f32 %v172, %v467
    %v469 = vpop.f32.mrf.mxu0
    %470 = vmatprep.mubr.bf16.mxu0 0
    %471 = vmatmul.mubr.bf16.gmra.mxu0 %v253
    %v472 = vpop.f32.mrf.mxu0
    %v473 = vadd.f32 %v172, %v472
    %v474 = vpop.f32.mrf.mxu0
    %v475 = vpop.f32.mrf.mxu0
    %v476 = vadd.f32 %v172, %v475
    %v477 = vpop.f32.mrf.mxu0
    %478 = vdwg.mxu0
    %v479 = vld [vmem:[#allocation8] sm:$0xf]
    %v480 = vld [vmem:[#allocation8 + $0x4] sm:$0xf]
    %v481 = vld [vmem:[#allocation8 + $0x8] sm:$0xf]
    %v482 = vld [vmem:[#allocation8 + $0xc] sm:$0xf]
    %v483 = vld [vmem:[#allocation8 + $0x10] sm:$0xf]
    %v484 = vld [vmem:[#allocation8 + $0x14] sm:$0xf]
    %v485 = vld [vmem:[#allocation8 + $0x18] sm:$0xf]
    %v486 = vld [vmem:[#allocation8 + $0x1c] sm:$0xf]
    %v487 = vld [vmem:[#allocation8 + $0x20] sm:$0xf]
    %v488 = vld [vmem:[#allocation8 + $0x24] sm:$0xf]
    %v489 = vld [vmem:[#allocation8 + $0x28] sm:$0xf]
    %v490 = vld [vmem:[#allocation8 + $0x2c] sm:$0xf]
    %v491 = vld [vmem:[#allocation8 + $0x30] sm:$0xf]
    %v492 = vld [vmem:[#allocation8 + $0x34] sm:$0xf]
    %v493 = vld [vmem:[#allocation8 + $0x38] sm:$0xf]
    %v494 = vld [vmem:[#allocation8 + $0x3c] sm:$0xf]
    %v495 = vpack.c.bf16 %v356, %v353
    %v496 = vpack.c.bf16 %v364, %v361
    %v497 = vpack.c.bf16 %v372, %v369
    %v498 = vpack.c.bf16 %v380, %v377
    %v499 = vpack.c.bf16 %v388, %v385
    %v500 = vpack.c.bf16 %v396, %v393
    %v501 = vpack.c.bf16 %v404, %v401
    %v502 = vpack.c.bf16 %v412, %v409
    %v503 = vpack.c.bf16 %v420, %v417
    %v504 = vpack.c.bf16 %v428, %v425
    %v505 = vpack.c.bf16 %v436, %v433
    %v506 = vpack.c.bf16 %v444, %v441
    %v507 = vpack.c.bf16 %v452, %v449
    %v508 = vpack.c.bf16 %v460, %v457
    %v509 = vpack.c.bf16 %v468, %v465
    %v510 = vpack.c.bf16 %v476, %v473
    %v511 = vld [vmem:[%s5] sm:$0x1]
    %v513 = vlaneseq
    %v514 = vshrl.u32 %v513, 7
    %v515 = vsub.s32 0, %v514
    %v516 = vrot.slane %v511, %v515
    %v534 = vunpack.c.l.b16 %v479
    %v535 = vunpack.c.l.b16 %v480
    %v536 = vunpack.c.l.b16 %v481
    %v537 = vunpack.c.l.b16 %v482
    %v538 = vunpack.c.l.b16 %v483
    %v539 = vunpack.c.l.b16 %v484
    %v540 = vunpack.c.l.b16 %v485
    %v541 = vunpack.c.l.b16 %v486
    %v542 = vunpack.c.l.b16 %v487
    %v543 = vunpack.c.l.b16 %v488
    %v544 = vunpack.c.l.b16 %v489
    %v545 = vunpack.c.l.b16 %v490
    %v546 = vunpack.c.l.b16 %v491
    %v547 = vunpack.c.l.b16 %v492
    %v548 = vunpack.c.l.b16 %v493
    %v549 = vunpack.c.l.b16 %v494
    %v550 = vpack.c.b16 %v535, %v534
    %v551 = vpack.c.b16 %v537, %v536
    %v552 = vpack.c.b16 %v539, %v538
    %v553 = vpack.c.b16 %v541, %v540
    %v554 = vpack.c.b16 %v543, %v542
    %v555 = vpack.c.b16 %v545, %v544
    %v556 = vpack.c.b16 %v547, %v546
    %v557 = vpack.c.b16 %v549, %v548
    %566 = vmatprep.subr.bf16.mxu0 0
    %567 = vmatpush1.bf16.msra.mxu0 %v557
    %568 = vmatprep.subr.bf16.mxu0 0
    %569 = vmatpush1.bf16.msra.mxu0 %v556
    %570 = vmatprep.subr.bf16.mxu0 0
    %571 = vmatpush1.bf16.msra.mxu0 %v555
    %572 = vmatprep.subr.bf16.mxu0 0
    %573 = vmatpush1.bf16.msra.mxu0 %v554
    %574 = vmatprep.subr.bf16.mxu0 0
    %575 = vmatpush1.bf16.msra.mxu0 %v553
    %576 = vmatprep.subr.bf16.mxu0 0
    %577 = vmatpush1.bf16.msra.mxu0 %v552
    %578 = vmatprep.subr.bf16.mxu0 0
    %579 = vmatpush1.bf16.msra.mxu0 %v551
    %580 = vmatprep.subr.bf16.mxu0 0
    %581 = vmatpush1.bf16.msra.mxu0 %v550
    %582 = vmatprep.subr.bf16.mxu0 0
    %583 = vmatpush2.bf16.msra.mxu0 0
    %584 = vmatprep.subr.bf16.mxu0 0
    %585 = vmatpush2.bf16.msra.mxu0 0
    %586 = vmatprep.subr.bf16.mxu0 0
    %587 = vmatpush2.bf16.msra.mxu0 0
    %588 = vmatprep.subr.bf16.mxu0 0
    %589 = vmatpush2.bf16.msra.mxu0 0
    %590 = vmatprep.subr.bf16.mxu0 0
    %591 = vmatpush2.bf16.msra.mxu0 0
    %592 = vmatprep.subr.bf16.mxu0 0
    %593 = vmatpush2.bf16.msra.mxu0 0
    %594 = vmatprep.subr.bf16.mxu0 0
    %595 = vmatpush2.bf16.msra.mxu0 0
    %596 = vmatprep.subr.bf16.mxu0 0
    %597 = vmatpush2.bf16.msra.mxu0 0
    %598 = vmatprep.mubr.bf16.mxu0 0
    %599 = vmatmul.mubr.bf16.gmra.mxu0 %v495
    %v600 = vpop.f32.mrf.mxu0
    %v601 = vadd.f32 %v516, %v600
    %v602 = vpop.f32.mrf.mxu0
    %v603 = vpop.f32.mrf.mxu0
    %v604 = vadd.f32 %v516, %v603
    %v605 = vpop.f32.mrf.mxu0
    %606 = vmatprep.mubr.bf16.mxu0 0
    %607 = vmatmul.mubr.bf16.gmra.mxu0 %v496
    %v608 = vpop.f32.mrf.mxu0
    %v609 = vadd.f32 %v516, %v608
    %v610 = vpop.f32.mrf.mxu0
    %v611 = vpop.f32.mrf.mxu0
    %v612 = vadd.f32 %v516, %v611
    %v613 = vpop.f32.mrf.mxu0
    %614 = vmatprep.mubr.bf16.mxu0 0
    %615 = vmatmul.mubr.bf16.gmra.mxu0 %v497
    %v616 = vpop.f32.mrf.mxu0
    %v617 = vadd.f32 %v516, %v616
    %v618 = vpop.f32.mrf.mxu0
    %v619 = vpop.f32.mrf.mxu0
    %v620 = vadd.f32 %v516, %v619
    %v621 = vpop.f32.mrf.mxu0
    %622 = vmatprep.mubr.bf16.mxu0 0
    %623 = vmatmul.mubr.bf16.gmra.mxu0 %v498
    %v624 = vpop.f32.mrf.mxu0
    %v625 = vadd.f32 %v516, %v624
    %v626 = vpop.f32.mrf.mxu0
    %v627 = vpop.f32.mrf.mxu0
    %v628 = vadd.f32 %v516, %v627
    %v629 = vpop.f32.mrf.mxu0
    %630 = vmatprep.mubr.bf16.mxu0 0
    %631 = vmatmul.mubr.bf16.gmra.mxu0 %v499
    %v632 = vpop.f32.mrf.mxu0
    %v633 = vadd.f32 %v516, %v632
    %v634 = vpop.f32.mrf.mxu0
    %v635 = vpop.f32.mrf.mxu0
    %v636 = vadd.f32 %v516, %v635
    %v637 = vpop.f32.mrf.mxu0
    %638 = vmatprep.mubr.bf16.mxu0 0
    %639 = vmatmul.mubr.bf16.gmra.mxu0 %v500
    %v640 = vpop.f32.mrf.mxu0
    %v641 = vadd.f32 %v516, %v640
    %v642 = vpop.f32.mrf.mxu0
    %v643 = vpop.f32.mrf.mxu0
    %v644 = vadd.f32 %v516, %v643
    %v645 = vpop.f32.mrf.mxu0
    %646 = vmatprep.mubr.bf16.mxu0 0
    %647 = vmatmul.mubr.bf16.gmra.mxu0 %v501
    %v648 = vpop.f32.mrf.mxu0
    %v649 = vadd.f32 %v516, %v648
    %v650 = vpop.f32.mrf.mxu0
    %v651 = vpop.f32.mrf.mxu0
    %v652 = vadd.f32 %v516, %v651
    %v653 = vpop.f32.mrf.mxu0
    %654 = vmatprep.mubr.bf16.mxu0 0
    %655 = vmatmul.mubr.bf16.gmra.mxu0 %v502
    %v656 = vpop.f32.mrf.mxu0
    %v657 = vadd.f32 %v516, %v656
    %v658 = vpop.f32.mrf.mxu0
    %v659 = vpop.f32.mrf.mxu0
    %v660 = vadd.f32 %v516, %v659
    %v661 = vpop.f32.mrf.mxu0
    %662 = vmatprep.mubr.bf16.mxu0 0
    %663 = vmatmul.mubr.bf16.gmra.mxu0 %v503
    %v664 = vpop.f32.mrf.mxu0
    %v665 = vadd.f32 %v516, %v664
    %v666 = vpop.f32.mrf.mxu0
    %v667 = vpop.f32.mrf.mxu0
    %v668 = vadd.f32 %v516, %v667
    %v669 = vpop.f32.mrf.mxu0
    %670 = vmatprep.mubr.bf16.mxu0 0
    %671 = vmatmul.mubr.bf16.gmra.mxu0 %v504
    %v672 = vpop.f32.mrf.mxu0
    %v673 = vadd.f32 %v516, %v672
    %v674 = vpop.f32.mrf.mxu0
    %v675 = vpop.f32.mrf.mxu0
    %v676 = vadd.f32 %v516, %v675
    %v677 = vpop.f32.mrf.mxu0
    %678 = vmatprep.mubr.bf16.mxu0 0
    %679 = vmatmul.mubr.bf16.gmra.mxu0 %v505
    %v680 = vpop.f32.mrf.mxu0
    %v681 = vadd.f32 %v516, %v680
    %v682 = vpop.f32.mrf.mxu0
    %v683 = vpop.f32.mrf.mxu0
    %v684 = vadd.f32 %v516, %v683
    %v685 = vpop.f32.mrf.mxu0
    %686 = vmatprep.mubr.bf16.mxu0 0
    %687 = vmatmul.mubr.bf16.gmra.mxu0 %v506
    %v688 = vpop.f32.mrf.mxu0
    %v689 = vadd.f32 %v516, %v688
    %v690 = vpop.f32.mrf.mxu0
    %v691 = vpop.f32.mrf.mxu0
    %v692 = vadd.f32 %v516, %v691
    %v693 = vpop.f32.mrf.mxu0
    %694 = vmatprep.mubr.bf16.mxu0 0
    %695 = vmatmul.mubr.bf16.gmra.mxu0 %v507
    %v696 = vpop.f32.mrf.mxu0
    %v697 = vadd.f32 %v516, %v696
    %v698 = vpop.f32.mrf.mxu0
    %v699 = vpop.f32.mrf.mxu0
    %v700 = vadd.f32 %v516, %v699
    %v701 = vpop.f32.mrf.mxu0
    %702 = vmatprep.mubr.bf16.mxu0 0
    %703 = vmatmul.mubr.bf16.gmra.mxu0 %v508
    %v704 = vpop.f32.mrf.mxu0
    %v705 = vadd.f32 %v516, %v704
    %v706 = vpop.f32.mrf.mxu0
    %v707 = vpop.f32.mrf.mxu0
    %v708 = vadd.f32 %v516, %v707
    %v709 = vpop.f32.mrf.mxu0
    %710 = vmatprep.mubr.bf16.mxu0 0
    %711 = vmatmul.mubr.bf16.gmra.mxu0 %v509
    %v712 = vpop.f32.mrf.mxu0
    %v713 = vadd.f32 %v516, %v712
    %v714 = vpop.f32.mrf.mxu0
    %v715 = vpop.f32.mrf.mxu0
    %v716 = vadd.f32 %v516, %v715
    %v717 = vpop.f32.mrf.mxu0
    %718 = vmatprep.mubr.bf16.mxu0 0
    %719 = vmatmul.mubr.bf16.gmra.mxu0 %v510
    %v720 = vpop.f32.mrf.mxu0
    %v721 = vadd.f32 %v516, %v720
    %v722 = vpop.f32.mrf.mxu0
    %v723 = vpop.f32.mrf.mxu0
    %v724 = vadd.f32 %v516, %v723
    %v725 = vpop.f32.mrf.mxu0
    %726 = vdwg.mxu0
    %v727 = vld [vmem:[#allocation2] sm:$0xff]
    %v728 = vld [vmem:[#allocation2 + $0x8] sm:$0xff]
    %v729 = vld [vmem:[#allocation2 + $0x10] sm:$0xff]
    %v730 = vld [vmem:[#allocation2 + $0x18] sm:$0xff]
    %v731 = vld [vmem:[#allocation2 + $0x20] sm:$0xff]
    %v732 = vld [vmem:[#allocation2 + $0x28] sm:$0xff]
    %v733 = vld [vmem:[#allocation2 + $0x30] sm:$0xff]
    %v734 = vld [vmem:[#allocation2 + $0x38] sm:$0xff]
    %v735 = vld [vmem:[#allocation2 + $0x40] sm:$0xff]
    %v736 = vld [vmem:[#allocation2 + $0x48] sm:$0xff]
    %v737 = vld [vmem:[#allocation2 + $0x50] sm:$0xff]
    %v738 = vld [vmem:[#allocation2 + $0x58] sm:$0xff]
    %v739 = vld [vmem:[#allocation2 + $0x60] sm:$0xff]
    %v740 = vld [vmem:[#allocation2 + $0x68] sm:$0xff]
    %v741 = vld [vmem:[#allocation2 + $0x70] sm:$0xff]
    %v742 = vld [vmem:[#allocation2 + $0x78] sm:$0xff]
    %v743 = vld [vmem:[#allocation2 + $0x80] sm:$0xff]
    %v744 = vld [vmem:[#allocation2 + $0x88] sm:$0xff]
    %v745 = vld [vmem:[#allocation2 + $0x90] sm:$0xff]
    %v746 = vld [vmem:[#allocation2 + $0x98] sm:$0xff]
    %v747 = vld [vmem:[#allocation2 + $0xa0] sm:$0xff]
    %v748 = vld [vmem:[#allocation2 + $0xa8] sm:$0xff]
    %v749 = vld [vmem:[#allocation2 + $0xb0] sm:$0xff]
    %v750 = vld [vmem:[#allocation2 + $0xb8] sm:$0xff]
    %v751 = vld [vmem:[#allocation2 + $0xc0] sm:$0xff]
    %v752 = vld [vmem:[#allocation2 + $0xc8] sm:$0xff]
    %v753 = vld [vmem:[#allocation2 + $0xd0] sm:$0xff]
    %v754 = vld [vmem:[#allocation2 + $0xd8] sm:$0xff]
    %v755 = vld [vmem:[#allocation2 + $0xe0] sm:$0xff]
    %v756 = vld [vmem:[#allocation2 + $0xe8] sm:$0xff]
    %v757 = vld [vmem:[#allocation2 + $0xf0] sm:$0xff]
    %v758 = vld [vmem:[#allocation2 + $0xf8] sm:$0xff]
    %v759 = vpack.c.bf16 %v604, %v601
    %v760 = vpack.c.bf16 %v612, %v609
    %v761 = vpack.c.bf16 %v620, %v617
    %v762 = vpack.c.bf16 %v628, %v625
    %v763 = vpack.c.bf16 %v636, %v633
    %v764 = vpack.c.bf16 %v644, %v641
    %v765 = vpack.c.bf16 %v652, %v649
    %v766 = vpack.c.bf16 %v660, %v657
    %v767 = vpack.c.bf16 %v668, %v665
    %v768 = vpack.c.bf16 %v676, %v673
    %v769 = vpack.c.bf16 %v684, %v681
    %v770 = vpack.c.bf16 %v692, %v689
    %v771 = vpack.c.bf16 %v700, %v697
    %v772 = vpack.c.bf16 %v708, %v705
    %v773 = vpack.c.bf16 %v716, %v713
    %v774 = vpack.c.bf16 %v724, %v721
    %v807 = vunpack.c.l.b16 %v727
    %v808 = vunpack.c.h.b16 %v727
    %v809 = vunpack.c.l.b16 %v728
    %v810 = vunpack.c.h.b16 %v728
    %v811 = vunpack.c.l.b16 %v729
    %v812 = vunpack.c.h.b16 %v729
    %v813 = vunpack.c.l.b16 %v730
    %v814 = vunpack.c.h.b16 %v730
    %v815 = vunpack.c.l.b16 %v731
    %v816 = vunpack.c.h.b16 %v731
    %v817 = vunpack.c.l.b16 %v732
    %v818 = vunpack.c.h.b16 %v732
    %v819 = vunpack.c.l.b16 %v733
    %v820 = vunpack.c.h.b16 %v733
    %v821 = vunpack.c.l.b16 %v734
    %v822 = vunpack.c.h.b16 %v734
    %v823 = vunpack.c.l.b16 %v735
    %v824 = vunpack.c.h.b16 %v735
    %v825 = vunpack.c.l.b16 %v736
    %v826 = vunpack.c.h.b16 %v736
    %v827 = vunpack.c.l.b16 %v737
    %v828 = vunpack.c.h.b16 %v737
    %v829 = vunpack.c.l.b16 %v738
    %v830 = vunpack.c.h.b16 %v738
    %v831 = vunpack.c.l.b16 %v739
    %v832 = vunpack.c.h.b16 %v739
    %v833 = vunpack.c.l.b16 %v740
    %v834 = vunpack.c.h.b16 %v740
    %v835 = vunpack.c.l.b16 %v741
    %v836 = vunpack.c.h.b16 %v741
    %v837 = vunpack.c.l.b16 %v742
    %v838 = vunpack.c.h.b16 %v742
    %v839 = vunpack.c.l.b16 %v743
    %v840 = vunpack.c.h.b16 %v743
    %v841 = vunpack.c.l.b16 %v744
    %v842 = vunpack.c.h.b16 %v744
    %v843 = vunpack.c.l.b16 %v745
    %v844 = vunpack.c.h.b16 %v745
    %v845 = vunpack.c.l.b16 %v746
    %v846 = vunpack.c.h.b16 %v746
    %v847 = vunpack.c.l.b16 %v747
    %v848 = vunpack.c.h.b16 %v747
    %v849 = vunpack.c.l.b16 %v748
    %v850 = vunpack.c.h.b16 %v748
    %v851 = vunpack.c.l.b16 %v749
    %v852 = vunpack.c.h.b16 %v749
    %v853 = vunpack.c.l.b16 %v750
    %v854 = vunpack.c.h.b16 %v750
    %v855 = vunpack.c.l.b16 %v751
    %v856 = vunpack.c.h.b16 %v751
    %v857 = vunpack.c.l.b16 %v752
    %v858 = vunpack.c.h.b16 %v752
    %v859 = vunpack.c.l.b16 %v753
    %v860 = vunpack.c.h.b16 %v753
    %v861 = vunpack.c.l.b16 %v754
    %v862 = vunpack.c.h.b16 %v754
    %v863 = vunpack.c.l.b16 %v755
    %v864 = vunpack.c.h.b16 %v755
    %v865 = vunpack.c.l.b16 %v756
    %v866 = vunpack.c.h.b16 %v756
    %v867 = vunpack.c.l.b16 %v757
    %v868 = vunpack.c.h.b16 %v757
    %v869 = vunpack.c.l.b16 %v758
    %v870 = vunpack.c.h.b16 %v758
    %v871 = vpack.c.b16 %v809, %v807
    %v872 = vpack.c.b16 %v810, %v808
    %v873 = vpack.c.b16 %v813, %v811
    %v874 = vpack.c.b16 %v814, %v812
    %v875 = vpack.c.b16 %v817, %v815
    %v876 = vpack.c.b16 %v818, %v816
    %v877 = vpack.c.b16 %v821, %v819
    %v878 = vpack.c.b16 %v822, %v820
    %v879 = vpack.c.b16 %v825, %v823
    %v880 = vpack.c.b16 %v826, %v824
    %v881 = vpack.c.b16 %v829, %v827
    %v882 = vpack.c.b16 %v830, %v828
    %v883 = vpack.c.b16 %v833, %v831
    %v884 = vpack.c.b16 %v834, %v832
    %v885 = vpack.c.b16 %v837, %v835
    %v886 = vpack.c.b16 %v838, %v836
    %v887 = vpack.c.b16 %v841, %v839
    %v888 = vpack.c.b16 %v842, %v840
    %v889 = vpack.c.b16 %v845, %v843
    %v890 = vpack.c.b16 %v846, %v844
    %v891 = vpack.c.b16 %v849, %v847
    %v892 = vpack.c.b16 %v850, %v848
    %v893 = vpack.c.b16 %v853, %v851
    %v894 = vpack.c.b16 %v854, %v852
    %v895 = vpack.c.b16 %v857, %v855
    %v896 = vpack.c.b16 %v858, %v856
    %v897 = vpack.c.b16 %v861, %v859
    %v898 = vpack.c.b16 %v862, %v860
    %v899 = vpack.c.b16 %v865, %v863
    %v900 = vpack.c.b16 %v866, %v864
    %v901 = vpack.c.b16 %v869, %v867
    %v902 = vpack.c.b16 %v870, %v868
    %935 = vmatprep.subr.bf16.mxu0 0
    %936 = vmatpush1.bf16.msra.mxu0 %v766
    %937 = vmatprep.subr.bf16.mxu0 0
    %938 = vmatpush1.bf16.msra.mxu0 %v765
    %939 = vmatprep.subr.bf16.mxu0 0
    %940 = vmatpush1.bf16.msra.mxu0 %v764
    %941 = vmatprep.subr.bf16.mxu0 0
    %942 = vmatpush1.bf16.msra.mxu0 %v763
    %943 = vmatprep.subr.bf16.mxu0 0
    %944 = vmatpush1.bf16.msra.mxu0 %v762
    %945 = vmatprep.subr.bf16.mxu0 0
    %946 = vmatpush1.bf16.msra.mxu0 %v761
    %947 = vmatprep.subr.bf16.mxu0 0
    %948 = vmatpush1.bf16.msra.mxu0 %v760
    %949 = vmatprep.subr.bf16.mxu0 0
    %950 = vmatpush1.bf16.msra.mxu0 %v759
    %951 = vmatprep.subr.bf16.mxu0 0
    %952 = vmatpush2.bf16.msra.mxu0 %v774
    %953 = vmatprep.subr.bf16.mxu0 0
    %954 = vmatpush2.bf16.msra.mxu0 %v773
    %955 = vmatprep.subr.bf16.mxu0 0
    %956 = vmatpush2.bf16.msra.mxu0 %v772
    %957 = vmatprep.subr.bf16.mxu0 0
    %958 = vmatpush2.bf16.msra.mxu0 %v771
    %959 = vmatprep.subr.bf16.mxu0 0
    %960 = vmatpush2.bf16.msra.mxu0 %v770
    %961 = vmatprep.subr.bf16.mxu0 0
    %962 = vmatpush2.bf16.msra.mxu0 %v769
    %963 = vmatprep.subr.bf16.mxu0 0
    %964 = vmatpush2.bf16.msra.mxu0 %v768
    %965 = vmatprep.subr.bf16.mxu0 0
    %966 = vmatpush2.bf16.msra.mxu0 %v767
    %967 = vmatprep.mubr.bf16.mxu0 %v872
    %968 = vmatmul.mubr.bf16.gmra.mxu0 %v871
    %v969 = vpop.f32.mrf.mxu0
    %v970 = vadd.f32 0.0, %v969
    %v971 = vpop.f32.mrf.mxu0
    %v972 = vpop.f32.mrf.mxu0
    %v973 = vadd.f32 0.0, %v972
    %v974 = vpop.f32.mrf.mxu0
    %975 = vmatprep.mubr.bf16.mxu0 %v874
    %976 = vmatmul.mubr.bf16.gmra.mxu0 %v873
    %v977 = vpop.f32.mrf.mxu0
    %v978 = vadd.f32 0.0, %v977
    %v979 = vpop.f32.mrf.mxu0
    %v980 = vpop.f32.mrf.mxu0
    %v981 = vadd.f32 0.0, %v980
    %v982 = vpop.f32.mrf.mxu0
    %983 = vmatprep.mubr.bf16.mxu0 %v876
    %984 = vmatmul.mubr.bf16.gmra.mxu0 %v875
    %v985 = vpop.f32.mrf.mxu0
    %v986 = vadd.f32 0.0, %v985
    %v987 = vpop.f32.mrf.mxu0
    %v988 = vpop.f32.mrf.mxu0
    %v989 = vadd.f32 0.0, %v988
    %v990 = vpop.f32.mrf.mxu0
    %991 = vmatprep.mubr.bf16.mxu0 %v878
    %992 = vmatmul.mubr.bf16.gmra.mxu0 %v877
    %v993 = vpop.f32.mrf.mxu0
    %v994 = vadd.f32 0.0, %v993
    %v995 = vpop.f32.mrf.mxu0
    %v996 = vpop.f32.mrf.mxu0
    %v997 = vadd.f32 0.0, %v996
    %v998 = vpop.f32.mrf.mxu0
    %999 = vmatprep.mubr.bf16.mxu0 %v880
    %1000 = vmatmul.mubr.bf16.gmra.mxu0 %v879
    %v1001 = vpop.f32.mrf.mxu0
    %v1002 = vadd.f32 0.0, %v1001
    %v1003 = vpop.f32.mrf.mxu0
    %v1004 = vpop.f32.mrf.mxu0
    %v1005 = vadd.f32 0.0, %v1004
    %v1006 = vpop.f32.mrf.mxu0
    %1007 = vmatprep.mubr.bf16.mxu0 %v882
    %1008 = vmatmul.mubr.bf16.gmra.mxu0 %v881
    %v1009 = vpop.f32.mrf.mxu0
    %v1010 = vadd.f32 0.0, %v1009
    %v1011 = vpop.f32.mrf.mxu0
    %v1012 = vpop.f32.mrf.mxu0
    %v1013 = vadd.f32 0.0, %v1012
    %v1014 = vpop.f32.mrf.mxu0
    %1015 = vmatprep.mubr.bf16.mxu0 %v884
    %1016 = vmatmul.mubr.bf16.gmra.mxu0 %v883
    %v1017 = vpop.f32.mrf.mxu0
    %v1018 = vadd.f32 0.0, %v1017
    %v1019 = vpop.f32.mrf.mxu0
    %v1020 = vpop.f32.mrf.mxu0
    %v1021 = vadd.f32 0.0, %v1020
    %v1022 = vpop.f32.mrf.mxu0
    %1023 = vmatprep.mubr.bf16.mxu0 %v886
    %1024 = vmatmul.mubr.bf16.gmra.mxu0 %v885
    %v1025 = vpop.f32.mrf.mxu0
    %v1026 = vadd.f32 0.0, %v1025
    %v1027 = vpop.f32.mrf.mxu0
    %v1028 = vpop.f32.mrf.mxu0
    %v1029 = vadd.f32 0.0, %v1028
    %v1030 = vpop.f32.mrf.mxu0
    %1031 = vmatprep.mubr.bf16.mxu0 %v888
    %1032 = vmatmul.mubr.bf16.gmra.mxu0 %v887
    %v1033 = vpop.f32.mrf.mxu0
    %v1034 = vadd.f32 0.0, %v1033
    %v1035 = vpop.f32.mrf.mxu0
    %v1036 = vpop.f32.mrf.mxu0
    %v1037 = vadd.f32 0.0, %v1036
    %v1038 = vpop.f32.mrf.mxu0
    %1039 = vmatprep.mubr.bf16.mxu0 %v890
    %1040 = vmatmul.mubr.bf16.gmra.mxu0 %v889
    %v1041 = vpop.f32.mrf.mxu0
    %v1042 = vadd.f32 0.0, %v1041
    %v1043 = vpop.f32.mrf.mxu0
    %v1044 = vpop.f32.mrf.mxu0
    %v1045 = vadd.f32 0.0, %v1044
    %v1046 = vpop.f32.mrf.mxu0
    %1047 = vmatprep.mubr.bf16.mxu0 %v892
    %1048 = vmatmul.mubr.bf16.gmra.mxu0 %v891
    %v1049 = vpop.f32.mrf.mxu0
    %v1050 = vadd.f32 0.0, %v1049
    %v1051 = vpop.f32.mrf.mxu0
    %v1052 = vpop.f32.mrf.mxu0
    %v1053 = vadd.f32 0.0, %v1052
    %v1054 = vpop.f32.mrf.mxu0
    %1055 = vmatprep.mubr.bf16.mxu0 %v894
    %1056 = vmatmul.mubr.bf16.gmra.mxu0 %v893
    %v1057 = vpop.f32.mrf.mxu0
    %v1058 = vadd.f32 0.0, %v1057
    %v1059 = vpop.f32.mrf.mxu0
    %v1060 = vpop.f32.mrf.mxu0
    %v1061 = vadd.f32 0.0, %v1060
    %v1062 = vpop.f32.mrf.mxu0
    %1063 = vmatprep.mubr.bf16.mxu0 %v896
    %1064 = vmatmul.mubr.bf16.gmra.mxu0 %v895
    %v1065 = vpop.f32.mrf.mxu0
    %v1066 = vadd.f32 0.0, %v1065
    %v1067 = vpop.f32.mrf.mxu0
    %v1068 = vpop.f32.mrf.mxu0
    %v1069 = vadd.f32 0.0, %v1068
    %v1070 = vpop.f32.mrf.mxu0
    %1071 = vmatprep.mubr.bf16.mxu0 %v898
    %1072 = vmatmul.mubr.bf16.gmra.mxu0 %v897
    %v1073 = vpop.f32.mrf.mxu0
    %v1074 = vadd.f32 0.0, %v1073
    %v1075 = vpop.f32.mrf.mxu0
    %v1076 = vpop.f32.mrf.mxu0
    %v1077 = vadd.f32 0.0, %v1076
    %v1078 = vpop.f32.mrf.mxu0
    %1079 = vmatprep.mubr.bf16.mxu0 %v900
    %1080 = vmatmul.mubr.bf16.gmra.mxu0 %v899
    %v1081 = vpop.f32.mrf.mxu0
    %v1082 = vadd.f32 0.0, %v1081
    %v1083 = vpop.f32.mrf.mxu0
    %v1084 = vpop.f32.mrf.mxu0
    %v1085 = vadd.f32 0.0, %v1084
    %v1086 = vpop.f32.mrf.mxu0
    %1087 = vmatprep.mubr.bf16.mxu0 %v902
    %1088 = vmatmul.mubr.bf16.gmra.mxu0 %v901
    %v1089 = vpop.f32.mrf.mxu0
    %v1090 = vadd.f32 0.0, %v1089
    %v1091 = vpop.f32.mrf.mxu0
    %v1092 = vpop.f32.mrf.mxu0
    %v1093 = vadd.f32 0.0, %v1092
    %v1094 = vpop.f32.mrf.mxu0
    %1095 = vdwg.mxu0
    %v1096 = vmul.f32 %v970, 0.2
    %v1097 = vmul.f32 %v973, 0.2
    %v1098 = vmul.f32 %v978, 0.2
    %v1099 = vmul.f32 %v981, 0.2
    %v1100 = vmul.f32 %v986, 0.2
    %v1101 = vmul.f32 %v989, 0.2
    %v1102 = vmul.f32 %v994, 0.2
    %v1103 = vmul.f32 %v997, 0.2
    %v1104 = vmul.f32 %v1002, 0.2
    %v1105 = vmul.f32 %v1005, 0.2
    %v1106 = vmul.f32 %v1010, 0.2
    %v1107 = vmul.f32 %v1013, 0.2
    %v1108 = vmul.f32 %v1018, 0.2
    %v1109 = vmul.f32 %v1021, 0.2
    %v1110 = vmul.f32 %v1026, 0.2
    %v1111 = vmul.f32 %v1029, 0.2
    %v1112 = vmul.f32 %v1034, 0.2
    %v1113 = vmul.f32 %v1037, 0.2
    %v1114 = vmul.f32 %v1042, 0.2
    %v1115 = vmul.f32 %v1045, 0.2
    %v1116 = vmul.f32 %v1050, 0.2
    %v1117 = vmul.f32 %v1053, 0.2
    %v1118 = vmul.f32 %v1058, 0.2
    %v1119 = vmul.f32 %v1061, 0.2
    %v1120 = vmul.f32 %v1066, 0.2
    %v1121 = vmul.f32 %v1069, 0.2
    %v1122 = vmul.f32 %v1074, 0.2
    %v1123 = vmul.f32 %v1077, 0.2
    %v1124 = vmul.f32 %v1082, 0.2
    %v1125 = vmul.f32 %v1085, 0.2
    %v1126 = vmul.f32 %v1090, 0.2
    %v1127 = vmul.f32 %v1093, 0.2
    %v1128 = vmax.f32 %v970, %v1096
    %v1129 = vmax.f32 %v973, %v1097
    %v1130 = vmax.f32 %v978, %v1098
    %v1131 = vmax.f32 %v981, %v1099
    %v1132 = vmax.f32 %v986, %v1100
    %v1133 = vmax.f32 %v989, %v1101
    %v1134 = vmax.f32 %v994, %v1102
    %v1135 = vmax.f32 %v997, %v1103
    %v1136 = vmax.f32 %v1002, %v1104
    %v1137 = vmax.f32 %v1005, %v1105
    %v1138 = vmax.f32 %v1010, %v1106
    %v1139 = vmax.f32 %v1013, %v1107
    %v1140 = vmax.f32 %v1018, %v1108
    %v1141 = vmax.f32 %v1021, %v1109
    %v1142 = vmax.f32 %v1026, %v1110
    %v1143 = vmax.f32 %v1029, %v1111
    %v1144 = vmax.f32 %v1034, %v1112
    %v1145 = vmax.f32 %v1037, %v1113
    %v1146 = vmax.f32 %v1042, %v1114
    %v1147 = vmax.f32 %v1045, %v1115
    %v1148 = vmax.f32 %v1050, %v1116
    %v1149 = vmax.f32 %v1053, %v1117
    %v1150 = vmax.f32 %v1058, %v1118
    %v1151 = vmax.f32 %v1061, %v1119
    %v1152 = vmax.f32 %v1066, %v1120
    %v1153 = vmax.f32 %v1069, %v1121
    %v1154 = vmax.f32 %v1074, %v1122
    %v1155 = vmax.f32 %v1077, %v1123
    %v1156 = vmax.f32 %v1082, %v1124
    %v1157 = vmax.f32 %v1085, %v1125
    %v1158 = vmax.f32 %v1090, %v1126
    %v1159 = vmax.f32 %v1093, %v1127
    %v1160 = vld [vmem:[#allocation10] sm:$0xf]
    %v1161 = vld [vmem:[#allocation10 + $0x4] sm:$0xf]
    %v1162 = vld [vmem:[#allocation10 + $0x8] sm:$0xf]
    %v1163 = vld [vmem:[#allocation10 + $0xc] sm:$0xf]
    %v1164 = vld [vmem:[#allocation10 + $0x10] sm:$0xf]
    %v1165 = vld [vmem:[#allocation10 + $0x14] sm:$0xf]
    %v1166 = vld [vmem:[#allocation10 + $0x18] sm:$0xf]
    %v1167 = vld [vmem:[#allocation10 + $0x1c] sm:$0xf]
    %v1168 = vld [vmem:[#allocation10 + $0x20] sm:$0xf]
    %v1169 = vld [vmem:[#allocation10 + $0x24] sm:$0xf]
    %v1170 = vld [vmem:[#allocation10 + $0x28] sm:$0xf]
    %v1171 = vld [vmem:[#allocation10 + $0x2c] sm:$0xf]
    %v1172 = vld [vmem:[#allocation10 + $0x30] sm:$0xf]
    %v1173 = vld [vmem:[#allocation10 + $0x34] sm:$0xf]
    %v1174 = vld [vmem:[#allocation10 + $0x38] sm:$0xf]
    %v1175 = vld [vmem:[#allocation10 + $0x3c] sm:$0xf]
    %v1176 = vpack.c.bf16 %v1129, %v1128
    %v1177 = vpack.c.bf16 %v1131, %v1130
    %v1178 = vpack.c.bf16 %v1133, %v1132
    %v1179 = vpack.c.bf16 %v1135, %v1134
    %v1180 = vpack.c.bf16 %v1137, %v1136
    %v1181 = vpack.c.bf16 %v1139, %v1138
    %v1182 = vpack.c.bf16 %v1141, %v1140
    %v1183 = vpack.c.bf16 %v1143, %v1142
    %v1184 = vpack.c.bf16 %v1145, %v1144
    %v1185 = vpack.c.bf16 %v1147, %v1146
    %v1186 = vpack.c.bf16 %v1149, %v1148
    %v1187 = vpack.c.bf16 %v1151, %v1150
    %v1188 = vpack.c.bf16 %v1153, %v1152
    %v1189 = vpack.c.bf16 %v1155, %v1154
    %v1190 = vpack.c.bf16 %v1157, %v1156
    %v1191 = vpack.c.bf16 %v1159, %v1158
    %v1192 = vld [vmem:[%s7] sm:$0x1]
    %v1194 = vlaneseq
    %v1195 = vshrl.u32 %v1194, 7
    %v1196 = vsub.s32 0, %v1195
    %v1197 = vrot.slane %v1192, %v1196
    %v1215 = vunpack.c.l.b16 %v1160
    %v1216 = vunpack.c.l.b16 %v1161
    %v1217 = vunpack.c.l.b16 %v1162
    %v1218 = vunpack.c.l.b16 %v1163
    %v1219 = vunpack.c.l.b16 %v1164
    %v1220 = vunpack.c.l.b16 %v1165
    %v1221 = vunpack.c.l.b16 %v1166
    %v1222 = vunpack.c.l.b16 %v1167
    %v1223 = vunpack.c.l.b16 %v1168
    %v1224 = vunpack.c.l.b16 %v1169
    %v1225 = vunpack.c.l.b16 %v1170
    %v1226 = vunpack.c.l.b16 %v1171
    %v1227 = vunpack.c.l.b16 %v1172
    %v1228 = vunpack.c.l.b16 %v1173
    %v1229 = vunpack.c.l.b16 %v1174
    %v1230 = vunpack.c.l.b16 %v1175
    %v1231 = vpack.c.b16 %v1216, %v1215
    %v1232 = vpack.c.b16 %v1218, %v1217
    %v1233 = vpack.c.b16 %v1220, %v1219
    %v1234 = vpack.c.b16 %v1222, %v1221
    %v1235 = vpack.c.b16 %v1224, %v1223
    %v1236 = vpack.c.b16 %v1226, %v1225
    %v1237 = vpack.c.b16 %v1228, %v1227
    %v1238 = vpack.c.b16 %v1230, %v1229
    %1247 = vmatprep.subr.bf16.mxu0 0
    %1248 = vmatpush1.bf16.msra.mxu0 %v1238
    %1249 = vmatprep.subr.bf16.mxu0 0
    %1250 = vmatpush1.bf16.msra.mxu0 %v1237
    %1251 = vmatprep.subr.bf16.mxu0 0
    %1252 = vmatpush1.bf16.msra.mxu0 %v1236
    %1253 = vmatprep.subr.bf16.mxu0 0
    %1254 = vmatpush1.bf16.msra.mxu0 %v1235
    %1255 = vmatprep.subr.bf16.mxu0 0
    %1256 = vmatpush1.bf16.msra.mxu0 %v1234
    %1257 = vmatprep.subr.bf16.mxu0 0
    %1258 = vmatpush1.bf16.msra.mxu0 %v1233
    %1259 = vmatprep.subr.bf16.mxu0 0
    %1260 = vmatpush1.bf16.msra.mxu0 %v1232
    %1261 = vmatprep.subr.bf16.mxu0 0
    %1262 = vmatpush1.bf16.msra.mxu0 %v1231
    %1263 = vmatprep.subr.bf16.mxu0 0
    %1264 = vmatpush2.bf16.msra.mxu0 0
    %1265 = vmatprep.subr.bf16.mxu0 0
    %1266 = vmatpush2.bf16.msra.mxu0 0
    %1267 = vmatprep.subr.bf16.mxu0 0
    %1268 = vmatpush2.bf16.msra.mxu0 0
    %1269 = vmatprep.subr.bf16.mxu0 0
    %1270 = vmatpush2.bf16.msra.mxu0 0
    %1271 = vmatprep.subr.bf16.mxu0 0
    %1272 = vmatpush2.bf16.msra.mxu0 0
    %1273 = vmatprep.subr.bf16.mxu0 0
    %1274 = vmatpush2.bf16.msra.mxu0 0
    %1275 = vmatprep.subr.bf16.mxu0 0
    %1276 = vmatpush2.bf16.msra.mxu0 0
    %1277 = vmatprep.subr.bf16.mxu0 0
    %1278 = vmatpush2.bf16.msra.mxu0 0
    %1279 = vmatprep.mubr.bf16.mxu0 0
    %1280 = vmatmul.mubr.bf16.gmra.mxu0 %v1176
    %v1281 = vpop.f32.mrf.mxu0
    %v1282 = vadd.f32 %v1197, %v1281
    %v1283 = vpop.f32.mrf.mxu0
    %v1284 = vpop.f32.mrf.mxu0
    %v1285 = vadd.f32 %v1197, %v1284
    %v1286 = vpop.f32.mrf.mxu0
    %1287 = vmatprep.mubr.bf16.mxu0 0
    %1288 = vmatmul.mubr.bf16.gmra.mxu0 %v1177
    %v1289 = vpop.f32.mrf.mxu0
    %v1290 = vadd.f32 %v1197, %v1289
    %v1291 = vpop.f32.mrf.mxu0
    %v1292 = vpop.f32.mrf.mxu0
    %v1293 = vadd.f32 %v1197, %v1292
    %v1294 = vpop.f32.mrf.mxu0
    %1295 = vmatprep.mubr.bf16.mxu0 0
    %1296 = vmatmul.mubr.bf16.gmra.mxu0 %v1178
    %v1297 = vpop.f32.mrf.mxu0
    %v1298 = vadd.f32 %v1197, %v1297
    %v1299 = vpop.f32.mrf.mxu0
    %v1300 = vpop.f32.mrf.mxu0
    %v1301 = vadd.f32 %v1197, %v1300
    %v1302 = vpop.f32.mrf.mxu0
    %1303 = vmatprep.mubr.bf16.mxu0 0
    %1304 = vmatmul.mubr.bf16.gmra.mxu0 %v1179
    %v1305 = vpop.f32.mrf.mxu0
    %v1306 = vadd.f32 %v1197, %v1305
    %v1307 = vpop.f32.mrf.mxu0
    %v1308 = vpop.f32.mrf.mxu0
    %v1309 = vadd.f32 %v1197, %v1308
    %v1310 = vpop.f32.mrf.mxu0
    %1311 = vmatprep.mubr.bf16.mxu0 0
    %1312 = vmatmul.mubr.bf16.gmra.mxu0 %v1180
    %v1313 = vpop.f32.mrf.mxu0
    %v1314 = vadd.f32 %v1197, %v1313
    %v1315 = vpop.f32.mrf.mxu0
    %v1316 = vpop.f32.mrf.mxu0
    %v1317 = vadd.f32 %v1197, %v1316
    %v1318 = vpop.f32.mrf.mxu0
    %1319 = vmatprep.mubr.bf16.mxu0 0
    %1320 = vmatmul.mubr.bf16.gmra.mxu0 %v1181
    %v1321 = vpop.f32.mrf.mxu0
    %v1322 = vadd.f32 %v1197, %v1321
    %v1323 = vpop.f32.mrf.mxu0
    %v1324 = vpop.f32.mrf.mxu0
    %v1325 = vadd.f32 %v1197, %v1324
    %v1326 = vpop.f32.mrf.mxu0
    %1327 = vmatprep.mubr.bf16.mxu0 0
    %1328 = vmatmul.mubr.bf16.gmra.mxu0 %v1182
    %v1329 = vpop.f32.mrf.mxu0
    %v1330 = vadd.f32 %v1197, %v1329
    %v1331 = vpop.f32.mrf.mxu0
    %v1332 = vpop.f32.mrf.mxu0
    %v1333 = vadd.f32 %v1197, %v1332
    %v1334 = vpop.f32.mrf.mxu0
    %1335 = vmatprep.mubr.bf16.mxu0 0
    %1336 = vmatmul.mubr.bf16.gmra.mxu0 %v1183
    %v1337 = vpop.f32.mrf.mxu0
    %v1338 = vadd.f32 %v1197, %v1337
    %v1339 = vpop.f32.mrf.mxu0
    %v1340 = vpop.f32.mrf.mxu0
    %v1341 = vadd.f32 %v1197, %v1340
    %v1342 = vpop.f32.mrf.mxu0
    %1343 = vmatprep.mubr.bf16.mxu0 0
    %1344 = vmatmul.mubr.bf16.gmra.mxu0 %v1184
    %v1345 = vpop.f32.mrf.mxu0
    %v1346 = vadd.f32 %v1197, %v1345
    %v1347 = vpop.f32.mrf.mxu0
    %v1348 = vpop.f32.mrf.mxu0
    %v1349 = vadd.f32 %v1197, %v1348
    %v1350 = vpop.f32.mrf.mxu0
    %1351 = vmatprep.mubr.bf16.mxu0 0
    %1352 = vmatmul.mubr.bf16.gmra.mxu0 %v1185
    %v1353 = vpop.f32.mrf.mxu0
    %v1354 = vadd.f32 %v1197, %v1353
    %v1355 = vpop.f32.mrf.mxu0
    %v1356 = vpop.f32.mrf.mxu0
    %v1357 = vadd.f32 %v1197, %v1356
    %v1358 = vpop.f32.mrf.mxu0
    %1359 = vmatprep.mubr.bf16.mxu0 0
    %1360 = vmatmul.mubr.bf16.gmra.mxu0 %v1186
    %v1361 = vpop.f32.mrf.mxu0
    %v1362 = vadd.f32 %v1197, %v1361
    %v1363 = vpop.f32.mrf.mxu0
    %v1364 = vpop.f32.mrf.mxu0
    %v1365 = vadd.f32 %v1197, %v1364
    %v1366 = vpop.f32.mrf.mxu0
    %1367 = vmatprep.mubr.bf16.mxu0 0
    %1368 = vmatmul.mubr.bf16.gmra.mxu0 %v1187
    %v1369 = vpop.f32.mrf.mxu0
    %v1370 = vadd.f32 %v1197, %v1369
    %v1371 = vpop.f32.mrf.mxu0
    %v1372 = vpop.f32.mrf.mxu0
    %v1373 = vadd.f32 %v1197, %v1372
    %v1374 = vpop.f32.mrf.mxu0
    %1375 = vmatprep.mubr.bf16.mxu0 0
    %1376 = vmatmul.mubr.bf16.gmra.mxu0 %v1188
    %v1377 = vpop.f32.mrf.mxu0
    %v1378 = vadd.f32 %v1197, %v1377
    %v1379 = vpop.f32.mrf.mxu0
    %v1380 = vpop.f32.mrf.mxu0
    %v1381 = vadd.f32 %v1197, %v1380
    %v1382 = vpop.f32.mrf.mxu0
    %1383 = vmatprep.mubr.bf16.mxu0 0
    %1384 = vmatmul.mubr.bf16.gmra.mxu0 %v1189
    %v1385 = vpop.f32.mrf.mxu0
    %v1386 = vadd.f32 %v1197, %v1385
    %v1387 = vpop.f32.mrf.mxu0
    %v1388 = vpop.f32.mrf.mxu0
    %v1389 = vadd.f32 %v1197, %v1388
    %v1390 = vpop.f32.mrf.mxu0
    %1391 = vmatprep.mubr.bf16.mxu0 0
    %1392 = vmatmul.mubr.bf16.gmra.mxu0 %v1190
    %v1393 = vpop.f32.mrf.mxu0
    %v1394 = vadd.f32 %v1197, %v1393
    %v1395 = vpop.f32.mrf.mxu0
    %v1396 = vpop.f32.mrf.mxu0
    %v1397 = vadd.f32 %v1197, %v1396
    %v1398 = vpop.f32.mrf.mxu0
    %1399 = vmatprep.mubr.bf16.mxu0 0
    %1400 = vmatmul.mubr.bf16.gmra.mxu0 %v1191
    %v1401 = vpop.f32.mrf.mxu0
    %v1402 = vadd.f32 %v1197, %v1401
    %v1403 = vpop.f32.mrf.mxu0
    %v1404 = vpop.f32.mrf.mxu0
    %v1405 = vadd.f32 %v1197, %v1404
    %v1406 = vpop.f32.mrf.mxu0
    %1407 = vdwg.mxu0
    %v1408 = vmul.f32 %v1282, 0.2
    %v1409 = vmul.f32 %v1285, 0.2
    %v1410 = vmul.f32 %v1290, 0.2
    %v1411 = vmul.f32 %v1293, 0.2
    %v1412 = vmul.f32 %v1298, 0.2
    %v1413 = vmul.f32 %v1301, 0.2
    %v1414 = vmul.f32 %v1306, 0.2
    %v1415 = vmul.f32 %v1309, 0.2
    %v1416 = vmul.f32 %v1314, 0.2
    %v1417 = vmul.f32 %v1317, 0.2
    %v1418 = vmul.f32 %v1322, 0.2
    %v1419 = vmul.f32 %v1325, 0.2
    %v1420 = vmul.f32 %v1330, 0.2
    %v1421 = vmul.f32 %v1333, 0.2
    %v1422 = vmul.f32 %v1338, 0.2
    %v1423 = vmul.f32 %v1341, 0.2
    %v1424 = vmul.f32 %v1346, 0.2
    %v1425 = vmul.f32 %v1349, 0.2
    %v1426 = vmul.f32 %v1354, 0.2
    %v1427 = vmul.f32 %v1357, 0.2
    %v1428 = vmul.f32 %v1362, 0.2
    %v1429 = vmul.f32 %v1365, 0.2
    %v1430 = vmul.f32 %v1370, 0.2
    %v1431 = vmul.f32 %v1373, 0.2
    %v1432 = vmul.f32 %v1378, 0.2
    %v1433 = vmul.f32 %v1381, 0.2
    %v1434 = vmul.f32 %v1386, 0.2
    %v1435 = vmul.f32 %v1389, 0.2
    %v1436 = vmul.f32 %v1394, 0.2
    %v1437 = vmul.f32 %v1397, 0.2
    %v1438 = vmul.f32 %v1402, 0.2
    %v1439 = vmul.f32 %v1405, 0.2
    %v1440 = vmax.f32 %v1282, %v1408
    %v1441 = vmax.f32 %v1285, %v1409
    %v1442 = vmax.f32 %v1290, %v1410
    %v1443 = vmax.f32 %v1293, %v1411
    %v1444 = vmax.f32 %v1298, %v1412
    %v1445 = vmax.f32 %v1301, %v1413
    %v1446 = vmax.f32 %v1306, %v1414
    %v1447 = vmax.f32 %v1309, %v1415
    %v1448 = vmax.f32 %v1314, %v1416
    %v1449 = vmax.f32 %v1317, %v1417
    %v1450 = vmax.f32 %v1322, %v1418
    %v1451 = vmax.f32 %v1325, %v1419
    %v1452 = vmax.f32 %v1330, %v1420
    %v1453 = vmax.f32 %v1333, %v1421
    %v1454 = vmax.f32 %v1338, %v1422
    %v1455 = vmax.f32 %v1341, %v1423
    %v1456 = vmax.f32 %v1346, %v1424
    %v1457 = vmax.f32 %v1349, %v1425
    %v1458 = vmax.f32 %v1354, %v1426
    %v1459 = vmax.f32 %v1357, %v1427
    %v1460 = vmax.f32 %v1362, %v1428
    %v1461 = vmax.f32 %v1365, %v1429
    %v1462 = vmax.f32 %v1370, %v1430
    %v1463 = vmax.f32 %v1373, %v1431
    %v1464 = vmax.f32 %v1378, %v1432
    %v1465 = vmax.f32 %v1381, %v1433
    %v1466 = vmax.f32 %v1386, %v1434
    %v1467 = vmax.f32 %v1389, %v1435
    %v1468 = vmax.f32 %v1394, %v1436
    %v1469 = vmax.f32 %v1397, %v1437
    %v1470 = vmax.f32 %v1402, %v1438
    %v1471 = vmax.f32 %v1405, %v1439
    %v1472 = vld [vmem:[#allocation11] sm:$0xf]
    %v1473 = vld [vmem:[#allocation11 + $0x4] sm:$0xf]
    %v1474 = vld [vmem:[#allocation11 + $0x8] sm:$0xf]
    %v1475 = vld [vmem:[#allocation11 + $0xc] sm:$0xf]
    %v1476 = vld [vmem:[#allocation11 + $0x10] sm:$0xf]
    %v1477 = vld [vmem:[#allocation11 + $0x14] sm:$0xf]
    %v1478 = vld [vmem:[#allocation11 + $0x18] sm:$0xf]
    %v1479 = vld [vmem:[#allocation11 + $0x1c] sm:$0xf]
    %v1480 = vld [vmem:[#allocation11 + $0x20] sm:$0xf]
    %v1481 = vld [vmem:[#allocation11 + $0x24] sm:$0xf]
    %v1482 = vld [vmem:[#allocation11 + $0x28] sm:$0xf]
    %v1483 = vld [vmem:[#allocation11 + $0x2c] sm:$0xf]
    %v1484 = vld [vmem:[#allocation11 + $0x30] sm:$0xf]
    %v1485 = vld [vmem:[#allocation11 + $0x34] sm:$0xf]
    %v1486 = vld [vmem:[#allocation11 + $0x38] sm:$0xf]
    %v1487 = vld [vmem:[#allocation11 + $0x3c] sm:$0xf]
    %v1488 = vpack.c.bf16 %v1441, %v1440
    %v1489 = vpack.c.bf16 %v1443, %v1442
    %v1490 = vpack.c.bf16 %v1445, %v1444
    %v1491 = vpack.c.bf16 %v1447, %v1446
    %v1492 = vpack.c.bf16 %v1449, %v1448
    %v1493 = vpack.c.bf16 %v1451, %v1450
    %v1494 = vpack.c.bf16 %v1453, %v1452
    %v1495 = vpack.c.bf16 %v1455, %v1454
    %v1496 = vpack.c.bf16 %v1457, %v1456
    %v1497 = vpack.c.bf16 %v1459, %v1458
    %v1498 = vpack.c.bf16 %v1461, %v1460
    %v1499 = vpack.c.bf16 %v1463, %v1462
    %v1500 = vpack.c.bf16 %v1465, %v1464
    %v1501 = vpack.c.bf16 %v1467, %v1466
    %v1502 = vpack.c.bf16 %v1469, %v1468
    %v1503 = vpack.c.bf16 %v1471, %v1470
    %v1504 = vld [vmem:[%s9] sm:$0x1]
    %v1506 = vlaneseq
    %v1507 = vshrl.u32 %v1506, 7
    %v1508 = vsub.s32 0, %v1507
    %v1509 = vrot.slane %v1504, %v1508
    %v1527 = vunpack.c.l.b16 %v1472
    %v1528 = vunpack.c.l.b16 %v1473
    %v1529 = vunpack.c.l.b16 %v1474
    %v1530 = vunpack.c.l.b16 %v1475
    %v1531 = vunpack.c.l.b16 %v1476
    %v1532 = vunpack.c.l.b16 %v1477
    %v1533 = vunpack.c.l.b16 %v1478
    %v1534 = vunpack.c.l.b16 %v1479
    %v1535 = vunpack.c.l.b16 %v1480
    %v1536 = vunpack.c.l.b16 %v1481
    %v1537 = vunpack.c.l.b16 %v1482
    %v1538 = vunpack.c.l.b16 %v1483
    %v1539 = vunpack.c.l.b16 %v1484
    %v1540 = vunpack.c.l.b16 %v1485
    %v1541 = vunpack.c.l.b16 %v1486
    %v1542 = vunpack.c.l.b16 %v1487
    %v1543 = vpack.c.b16 %v1528, %v1527
    %v1544 = vpack.c.b16 %v1530, %v1529
    %v1545 = vpack.c.b16 %v1532, %v1531
    %v1546 = vpack.c.b16 %v1534, %v1533
    %v1547 = vpack.c.b16 %v1536, %v1535
    %v1548 = vpack.c.b16 %v1538, %v1537
    %v1549 = vpack.c.b16 %v1540, %v1539
    %v1550 = vpack.c.b16 %v1542, %v1541
    %1559 = vmatprep.subr.bf16.mxu0 0
    %1560 = vmatpush1.bf16.msra.mxu0 %v1550
    %1561 = vmatprep.subr.bf16.mxu0 0
    %1562 = vmatpush1.bf16.msra.mxu0 %v1549
    %1563 = vmatprep.subr.bf16.mxu0 0
    %1564 = vmatpush1.bf16.msra.mxu0 %v1548
    %1565 = vmatprep.subr.bf16.mxu0 0
    %1566 = vmatpush1.bf16.msra.mxu0 %v1547
    %1567 = vmatprep.subr.bf16.mxu0 0
    %1568 = vmatpush1.bf16.msra.mxu0 %v1546
    %1569 = vmatprep.subr.bf16.mxu0 0
    %1570 = vmatpush1.bf16.msra.mxu0 %v1545
    %1571 = vmatprep.subr.bf16.mxu0 0
    %1572 = vmatpush1.bf16.msra.mxu0 %v1544
    %1573 = vmatprep.subr.bf16.mxu0 0
    %1574 = vmatpush1.bf16.msra.mxu0 %v1543
    %1575 = vmatprep.subr.bf16.mxu0 0
    %1576 = vmatpush2.bf16.msra.mxu0 0
    %1577 = vmatprep.subr.bf16.mxu0 0
    %1578 = vmatpush2.bf16.msra.mxu0 0
    %1579 = vmatprep.subr.bf16.mxu0 0
    %1580 = vmatpush2.bf16.msra.mxu0 0
    %1581 = vmatprep.subr.bf16.mxu0 0
    %1582 = vmatpush2.bf16.msra.mxu0 0
    %1583 = vmatprep.subr.bf16.mxu0 0
    %1584 = vmatpush2.bf16.msra.mxu0 0
    %1585 = vmatprep.subr.bf16.mxu0 0
    %1586 = vmatpush2.bf16.msra.mxu0 0
    %1587 = vmatprep.subr.bf16.mxu0 0
    %1588 = vmatpush2.bf16.msra.mxu0 0
    %1589 = vmatprep.subr.bf16.mxu0 0
    %1590 = vmatpush2.bf16.msra.mxu0 0
    %1591 = vmatprep.mubr.bf16.mxu0 0
    %1592 = vmatmul.mubr.bf16.gmra.mxu0 %v1488
    %v1593 = vpop.f32.mrf.mxu0
    %v1594 = vadd.f32 %v1509, %v1593
    %v1595 = vpop.f32.mrf.mxu0
    %v1596 = vpop.f32.mrf.mxu0
    %v1597 = vadd.f32 %v1509, %v1596
    %v1598 = vpop.f32.mrf.mxu0
    %1599 = vmatprep.mubr.bf16.mxu0 0
    %1600 = vmatmul.mubr.bf16.gmra.mxu0 %v1489
    %v1601 = vpop.f32.mrf.mxu0
    %v1602 = vadd.f32 %v1509, %v1601
    %v1603 = vpop.f32.mrf.mxu0
    %v1604 = vpop.f32.mrf.mxu0
    %v1605 = vadd.f32 %v1509, %v1604
    %v1606 = vpop.f32.mrf.mxu0
    %1607 = vmatprep.mubr.bf16.mxu0 0
    %1608 = vmatmul.mubr.bf16.gmra.mxu0 %v1490
    %v1609 = vpop.f32.mrf.mxu0
    %v1610 = vadd.f32 %v1509, %v1609
    %v1611 = vpop.f32.mrf.mxu0
    %v1612 = vpop.f32.mrf.mxu0
    %v1613 = vadd.f32 %v1509, %v1612
    %v1614 = vpop.f32.mrf.mxu0
    %1615 = vmatprep.mubr.bf16.mxu0 0
    %1616 = vmatmul.mubr.bf16.gmra.mxu0 %v1491
    %v1617 = vpop.f32.mrf.mxu0
    %v1618 = vadd.f32 %v1509, %v1617
    %v1619 = vpop.f32.mrf.mxu0
    %v1620 = vpop.f32.mrf.mxu0
    %v1621 = vadd.f32 %v1509, %v1620
    %v1622 = vpop.f32.mrf.mxu0
    %1623 = vmatprep.mubr.bf16.mxu0 0
    %1624 = vmatmul.mubr.bf16.gmra.mxu0 %v1492
    %v1625 = vpop.f32.mrf.mxu0
    %v1626 = vadd.f32 %v1509, %v1625
    %v1627 = vpop.f32.mrf.mxu0
    %v1628 = vpop.f32.mrf.mxu0
    %v1629 = vadd.f32 %v1509, %v1628
    %v1630 = vpop.f32.mrf.mxu0
    %1631 = vmatprep.mubr.bf16.mxu0 0
    %1632 = vmatmul.mubr.bf16.gmra.mxu0 %v1493
    %v1633 = vpop.f32.mrf.mxu0
    %v1634 = vadd.f32 %v1509, %v1633
    %v1635 = vpop.f32.mrf.mxu0
    %v1636 = vpop.f32.mrf.mxu0
    %v1637 = vadd.f32 %v1509, %v1636
    %v1638 = vpop.f32.mrf.mxu0
    %1639 = vmatprep.mubr.bf16.mxu0 0
    %1640 = vmatmul.mubr.bf16.gmra.mxu0 %v1494
    %v1641 = vpop.f32.mrf.mxu0
    %v1642 = vadd.f32 %v1509, %v1641
    %v1643 = vpop.f32.mrf.mxu0
    %v1644 = vpop.f32.mrf.mxu0
    %v1645 = vadd.f32 %v1509, %v1644
    %v1646 = vpop.f32.mrf.mxu0
    %1647 = vmatprep.mubr.bf16.mxu0 0
    %1648 = vmatmul.mubr.bf16.gmra.mxu0 %v1495
    %v1649 = vpop.f32.mrf.mxu0
    %v1650 = vadd.f32 %v1509, %v1649
    %v1651 = vpop.f32.mrf.mxu0
    %v1652 = vpop.f32.mrf.mxu0
    %v1653 = vadd.f32 %v1509, %v1652
    %v1654 = vpop.f32.mrf.mxu0
    %1655 = vmatprep.mubr.bf16.mxu0 0
    %1656 = vmatmul.mubr.bf16.gmra.mxu0 %v1496
    %v1657 = vpop.f32.mrf.mxu0
    %v1658 = vadd.f32 %v1509, %v1657
    %v1659 = vpop.f32.mrf.mxu0
    %v1660 = vpop.f32.mrf.mxu0
    %v1661 = vadd.f32 %v1509, %v1660
    %v1662 = vpop.f32.mrf.mxu0
    %1663 = vmatprep.mubr.bf16.mxu0 0
    %1664 = vmatmul.mubr.bf16.gmra.mxu0 %v1497
    %v1665 = vpop.f32.mrf.mxu0
    %v1666 = vadd.f32 %v1509, %v1665
    %v1667 = vpop.f32.mrf.mxu0
    %v1668 = vpop.f32.mrf.mxu0
    %v1669 = vadd.f32 %v1509, %v1668
    %v1670 = vpop.f32.mrf.mxu0
    %1671 = vmatprep.mubr.bf16.mxu0 0
    %1672 = vmatmul.mubr.bf16.gmra.mxu0 %v1498
    %v1673 = vpop.f32.mrf.mxu0
    %v1674 = vadd.f32 %v1509, %v1673
    %v1675 = vpop.f32.mrf.mxu0
    %v1676 = vpop.f32.mrf.mxu0
    %v1677 = vadd.f32 %v1509, %v1676
    %v1678 = vpop.f32.mrf.mxu0
    %1679 = vmatprep.mubr.bf16.mxu0 0
    %1680 = vmatmul.mubr.bf16.gmra.mxu0 %v1499
    %v1681 = vpop.f32.mrf.mxu0
    %v1682 = vadd.f32 %v1509, %v1681
    %v1683 = vpop.f32.mrf.mxu0
    %v1684 = vpop.f32.mrf.mxu0
    %v1685 = vadd.f32 %v1509, %v1684
    %v1686 = vpop.f32.mrf.mxu0
    %1687 = vmatprep.mubr.bf16.mxu0 0
    %1688 = vmatmul.mubr.bf16.gmra.mxu0 %v1500
    %v1689 = vpop.f32.mrf.mxu0
    %v1690 = vadd.f32 %v1509, %v1689
    %v1691 = vpop.f32.mrf.mxu0
    %v1692 = vpop.f32.mrf.mxu0
    %v1693 = vadd.f32 %v1509, %v1692
    %v1694 = vpop.f32.mrf.mxu0
    %1695 = vmatprep.mubr.bf16.mxu0 0
    %1696 = vmatmul.mubr.bf16.gmra.mxu0 %v1501
    %v1697 = vpop.f32.mrf.mxu0
    %v1698 = vadd.f32 %v1509, %v1697
    %v1699 = vpop.f32.mrf.mxu0
    %v1700 = vpop.f32.mrf.mxu0
    %v1701 = vadd.f32 %v1509, %v1700
    %v1702 = vpop.f32.mrf.mxu0
    %1703 = vmatprep.mubr.bf16.mxu0 0
    %1704 = vmatmul.mubr.bf16.gmra.mxu0 %v1502
    %v1705 = vpop.f32.mrf.mxu0
    %v1706 = vadd.f32 %v1509, %v1705
    %v1707 = vpop.f32.mrf.mxu0
    %v1708 = vpop.f32.mrf.mxu0
    %v1709 = vadd.f32 %v1509, %v1708
    %v1710 = vpop.f32.mrf.mxu0
    %1711 = vmatprep.mubr.bf16.mxu0 0
    %1712 = vmatmul.mubr.bf16.gmra.mxu0 %v1503
    %v1713 = vpop.f32.mrf.mxu0
    %v1714 = vadd.f32 %v1509, %v1713
    %v1715 = vpop.f32.mrf.mxu0
    %v1716 = vpop.f32.mrf.mxu0
    %v1717 = vadd.f32 %v1509, %v1716
    %v1718 = vpop.f32.mrf.mxu0
    %1719 = vdwg.mxu0
    %1720 = vst [vmem:[#allocation13] sm:$0xff] %v1594
    %1721 = vst [vmem:[#allocation13 + $0x8] sm:$0xff] %v1597
    %1722 = vst [vmem:[#allocation13 + $0x10] sm:$0xff] %v1602
    %1723 = vst [vmem:[#allocation13 + $0x18] sm:$0xff] %v1605
    %1724 = vst [vmem:[#allocation13 + $0x20] sm:$0xff] %v1610
    %1725 = vst [vmem:[#allocation13 + $0x28] sm:$0xff] %v1613
    %1726 = vst [vmem:[#allocation13 + $0x30] sm:$0xff] %v1618
    %1727 = vst [vmem:[#allocation13 + $0x38] sm:$0xff] %v1621
    %1728 = vst [vmem:[#allocation13 + $0x40] sm:$0xff] %v1626
    %1729 = vst [vmem:[#allocation13 + $0x48] sm:$0xff] %v1629
    %1730 = vst [vmem:[#allocation13 + $0x50] sm:$0xff] %v1634
    %1731 = vst [vmem:[#allocation13 + $0x58] sm:$0xff] %v1637
    %1732 = vst [vmem:[#allocation13 + $0x60] sm:$0xff] %v1642
    %1733 = vst [vmem:[#allocation13 + $0x68] sm:$0xff] %v1645
    %1734 = vst [vmem:[#allocation13 + $0x70] sm:$0xff] %v1650
    %1735 = vst [vmem:[#allocation13 + $0x78] sm:$0xff] %v1653
    %1736 = vst [vmem:[#allocation13 + $0x80] sm:$0xff] %v1658
    %1737 = vst [vmem:[#allocation13 + $0x88] sm:$0xff] %v1661
    %1738 = vst [vmem:[#allocation13 + $0x90] sm:$0xff] %v1666
    %1739 = vst [vmem:[#allocation13 + $0x98] sm:$0xff] %v1669
    %1740 = vst [vmem:[#allocation13 + $0xa0] sm:$0xff] %v1674
    %1741 = vst [vmem:[#allocation13 + $0xa8] sm:$0xff] %v1677
    %1742 = vst [vmem:[#allocation13 + $0xb0] sm:$0xff] %v1682
    %1743 = vst [vmem:[#allocation13 + $0xb8] sm:$0xff] %v1685
    %1744 = vst [vmem:[#allocation13 + $0xc0] sm:$0xff] %v1690
    %1745 = vst [vmem:[#allocation13 + $0xc8] sm:$0xff] %v1693
    %1746 = vst [vmem:[#allocation13 + $0xd0] sm:$0xff] %v1698
    %1747 = vst [vmem:[#allocation13 + $0xd8] sm:$0xff] %v1701
    %1748 = vst [vmem:[#allocation13 + $0xe0] sm:$0xff] %v1706
    %1749 = vst [vmem:[#allocation13 + $0xe8] sm:$0xff] %v1709
    %1750 = vst [vmem:[#allocation13 + $0xf0] sm:$0xff] %v1714
    %1751 = vst [vmem:[#allocation13 + $0xf8] sm:$0xff] %v1717
    // Predicated region
    $region66: #{tpu_custom_call.1} parent=1 // pred_check
      _
    $region67: #{tpu_custom_call.1} parent=1 // pred_check_branch
      %1753 = sbr.rel (0) target = $region69
    $region68: #{tpu_custom_call.1} parent=1 // pred_region
      %s1755 = ssub.s32 4096, 4096
      %1756 = vsyncadd [#allocation4], %s1755
      %s1757 = sshll.u32 [#allocation13], 4
      %s1758 = int_to_ptr.vmem [resolvable:$true] %s1757
      %1763 = dma.vmem_to_hbm [thread:$0]  %s1758, 4096, %s10, [#allocation4], 128, 128, 8
    $region69: #{tpu_custom_call.1} parent=1 // pred_fallthru
      _
    // Predicated region
    $region70: #{tpu_custom_call.1} parent=1 // pred_check
      _
    $region71: #{tpu_custom_call.1} parent=1 // pred_check_branch
      %1765 = sbr.rel (0) target = $region73
    $region72: #{tpu_custom_call.1} parent=1 // pred_region
      %1766 = dma.done [#allocation4], 4096
    $region73: #{tpu_custom_call.1} parent=1 // pred_fallthru
      _
    %1767 = vsyncpa [#allocation3], 1
    %1768 = vsyncpa [#allocation6], 1
    %1769 = vsyncpa [#allocation9], 1
    %1770 = vsyncpa [#allocation12], 1
    %1771 = vsyncpa [#allocation4], 1

</llo_original>
